<compile_context>
chip_gen: v5e
topology: v5e:2x2
jax: 0.10.0
libtpu: 0.0.40
codegen_flags: <defaults>
</compile_context>

<pallas_src>
import jax
import jax.numpy as jnp
from jax.experimental import pallas as pl
from jax.experimental.pallas import tpu as pltpu

# ----------------------------- config (small) -----------------------------
HIDDEN = 32
NUM_HEADS = 2
HEAD_DIM = HIDDEN // NUM_HEADS
INTERMEDIATE = 64
N_EXPERTS = 2            # routing below assumes exactly 2 experts (per the spec)
LN_EPS = 1e-12
BATCH = 2
SEQ = 8

HP = 128                 # hidden padded to a full 128-lane vreg width
IP = 128                 # intermediate padded to 128 lanes


# ----------------------------- fused Pallas kernel -----------------------------
def _momoshare_kernel(x_ref, mask_ref,
                      asw_w_ref, asw_b_ref,
                      wqkv_ref, bqkv_ref, wo_ref, bo_ref, alg_ref, alb_ref,
                      fsw_w_ref, fsw_b_ref, w1_ref, b1_ref, w2_ref, b2_ref,
                      lng_ref, lnb_ref,
                      o_ref):
    f32 = jnp.float32
    inv_h = 1.0 / HIDDEN
    scale = 1.0 / float(HEAD_DIM) ** 0.5

    def layer_norm(h, g, b):
        # Padded lanes of h are zero -> lane sums equal sums over the real HIDDEN
        # width; g/b are zero in padded lanes so the output stays zero there.
        mu = jnp.sum(h, axis=-1, keepdims=True) * inv_h
        var = jnp.sum(h * h, axis=-1, keepdims=True) * inv_h - mu * mu
        return (h - mu) * jax.lax.rsqrt(var + LN_EPS) * g + b

    def route(h, w_ref, b_ref):
        # Switch router: routes = argmax(softmax(Linear(mean_seq(h)))).
        # softmax is monotone -> compare raw logits; ties -> expert 0 (torch.max).
        xm = jnp.mean(h, axis=1)                                        # (B, HP)
        l0 = jnp.sum(xm * w_ref[0], axis=-1, keepdims=True) + b_ref[0]  # (B, 1)
        l1 = jnp.sum(xm * w_ref[1], axis=-1, keepdims=True) + b_ref[1]
        c1 = (l1 > l0).astype(f32)[:, :, None]                          # (B, 1, 1)
        return 1.0 - c1, c1

    def pick(a0, a1, c0, c1):
        # {0,1} per-batch blend == hard gather of the routed expert's output
        return a0 * c0 + a1 * c1

    x = x_ref[...]                                                      # (B, S, HP)
    nb = (1.0 - mask_ref[...]) * (-10000.0)                             # (B, 1, S) additive bias

    # ---------------- SwitchAttention (routed BERT attention block) ----------------
    c0, c1 = route(x, asw_w_ref, asw_b_ref)

    qkv0 = jnp.dot(x, wqkv_ref[0], preferred_element_type=f32) + bqkv_ref[0]  # (B,S,3HP)
    qkv1 = jnp.dot(x, wqkv_ref[1], preferred_element_type=f32) + bqkv_ref[1]
    qkv = pick(qkv0, qkv1, c0, c1)
    q = qkv[:, :, 0:HP]
    k = qkv[:, :, HP:2 * HP]
    v = qkv[:, :, 2 * HP:3 * HP]

    # Heads via lane masks: contractions stay 128-lane dense; each head's context
    # lands in its own lanes so one output projection covers all heads.
    lane = jax.lax.broadcasted_iota(jnp.int32, (1, 1, HP), 2)
    ctx = jnp.zeros_like(q)
    for hd in range(NUM_HEADS):                                         # static unroll
        m = ((lane >= hd * HEAD_DIM) & (lane < (hd + 1) * HEAD_DIM)).astype(f32)
        s = jnp.einsum('bqd,bkd->bqk', q, k * m,
                       preferred_element_type=f32) * scale + nb
        s = s - jnp.max(s, axis=-1, keepdims=True)
        e = jnp.exp(s)
        p = e * pl.reciprocal(jnp.sum(e, axis=-1, keepdims=True), approx=True)
        ctx = ctx + jnp.einsum('bqk,bkd->bqd', p, v * m,
                               preferred_element_type=f32)

    a0 = jnp.dot(ctx, wo_ref[0], preferred_element_type=f32) + bo_ref[0]
    a1 = jnp.dot(ctx, wo_ref[1], preferred_element_type=f32) + bo_ref[1]
    att = pick(a0, a1, c0, c1)
    # BERT Attention output block: LayerNorm(dense(ctx) + input), per-expert LN params
    att = layer_norm(att + x,
                     pick(alg_ref[0], alg_ref[1], c0, c1),
                     pick(alb_ref[0], alb_ref[1], c0, c1))

    # ---------------- SwitchFeedForward (routed dense -> GELU -> dense) ------------
    d0, d1 = route(att, fsw_w_ref, fsw_b_ref)
    h0 = jax.nn.gelu(jnp.dot(att, w1_ref[0], preferred_element_type=f32) + b1_ref[0])
    h1 = jax.nn.gelu(jnp.dot(att, w1_ref[1], preferred_element_type=f32) + b1_ref[1])
    f0 = jnp.dot(h0, w2_ref[0], preferred_element_type=f32) + b2_ref[0]
    f1 = jnp.dot(h1, w2_ref[1], preferred_element_type=f32) + b2_ref[1]
    ff = pick(f0, f1, d0, d1)

    # -------- MoMoShareLayer combine: LayerNorm(att_output + dropout(ffn_output)) --
    o_ref[...] = layer_norm(att + ff, lng_ref[...], lnb_ref[...])


# ----------------------------- model glue (plain JAX) -----------------------------
@jax.jit
def momoshare_forward(packed, hidden_states, attention_mask):
    B, S, H = hidden_states.shape
    x = jnp.pad(hidden_states.astype(jnp.float32),
                ((0, 0), (0, 0), (0, HP - H)))                     # pad hidden -> 128 lanes
    m = attention_mask.astype(jnp.float32)[:, None, :]             # (B, 1, S)

    out = pl.pallas_call(
        _momoshare_kernel,
        out_shape=jax.ShapeDtypeStruct((B, S, HP), jnp.float32),
        compiler_params=pltpu.CompilerParams(vmem_limit_bytes=32 * 1024 * 1024),
    )(x, m,
      packed["asw_w"], packed["asw_b"],
      packed["wqkv"], packed["bqkv"], packed["wo"], packed["bo"],
      packed["att_ln_g"], packed["att_ln_b"],
      packed["fsw_w"], packed["fsw_b"],
      packed["w1"], packed["b1"], packed["w2"], packed["b2"],
      packed["ln_g"], packed["ln_b"])
    return out[:, :, :HIDDEN]                                      # drop lane padding


# ----------------------------- deterministic init & packing -----------------------------
def init_params(key):
    keys = iter(jax.random.split(key, 64))

    def nrm(shape, scale=0.02):
        return (scale * jax.random.normal(next(keys), shape)).astype(jnp.float32)

    E = N_EXPERTS
    return {
        # SwitchAttention: router + per-expert BERT attention block
        "att_switch_w": nrm((HIDDEN, E)), "att_switch_b": nrm((E,)),
        "wq": nrm((E, HIDDEN, HIDDEN)), "bq": nrm((E, HIDDEN)),
        "wk": nrm((E, HIDDEN, HIDDEN)), "bk": nrm((E, HIDDEN)),
        "wv": nrm((E, HIDDEN, HIDDEN)), "bv": nrm((E, HIDDEN)),
        "wo": nrm((E, HIDDEN, HIDDEN)), "bo": nrm((E, HIDDEN)),
        "att_ln_g": jnp.ones((E, HIDDEN), jnp.float32),
        "att_ln_b": jnp.zeros((E, HIDDEN), jnp.float32),
        # SwitchFeedForward: router + per-expert dense -> GELU -> dense
        "ffn_switch_w": nrm((HIDDEN, E)), "ffn_switch_b": nrm((E,)),
        "w1": nrm((E, HIDDEN, INTERMEDIATE)), "b1": nrm((E, INTERMEDIATE)),
        "w2": nrm((E, INTERMEDIATE, HIDDEN)), "b2": nrm((E, HIDDEN)),
        # MoMoShareLayer combine LayerNorm
        "ln_g": jnp.ones((HIDDEN,), jnp.float32),
        "ln_b": jnp.zeros((HIDDEN,), jnp.float32),
    }


def _pad_to(a, shape):
    return jnp.pad(a, [(0, t - s) for s, t in zip(a.shape, shape)])


def pack_params(p):
    """Zero-pad hidden/intermediate dims to 128 lanes and fuse Q/K/V per expert."""
    E = N_EXPERTS
    wq = _pad_to(p["wq"], (E, HP, HP))
    wk = _pad_to(p["wk"], (E, HP, HP))
    wv = _pad_to(p["wv"], (E, HP, HP))
    wqkv = jnp.concatenate([wq, wk, wv], axis=-1)                     # (E, HP, 3*HP)
    bqkv = jnp.concatenate([_pad_to(p["bq"][:, None, :], (E, 1, HP)),
                            _pad_to(p["bk"][:, None, :], (E, 1, HP)),
                            _pad_to(p["bv"][:, None, :], (E, 1, HP))], axis=-1)
    return {
        # routers stored as per-expert weight rows (E, 1, HP) + bias (E, 1, 1)
        "asw_w": _pad_to(p["att_switch_w"].T[:, None, :], (E, 1, HP)),
        "asw_b": p["att_switch_b"][:, None, None],
        "fsw_w": _pad_to(p["ffn_switch_w"].T[:, None, :], (E, 1, HP)),
        "fsw_b": p["ffn_switch_b"][:, None, None],
        "wqkv": wqkv, "bqkv": bqkv,
        "wo": _pad_to(p["wo"], (E, HP, HP)),
        "bo": _pad_to(p["bo"][:, None, :], (E, 1, HP)),
        "att_ln_g": _pad_to(p["att_ln_g"][:, None, :], (E, 1, HP)),
        "att_ln_b": _pad_to(p["att_ln_b"][:, None, :], (E, 1, HP)),
        "w1": _pad_to(p["w1"], (E, HP, IP)),
        "b1": _pad_to(p["b1"][:, None, :], (E, 1, IP)),
        "w2": _pad_to(p["w2"], (E, IP, HP)),
        "b2": _pad_to(p["b2"][:, None, :], (E, 1, HP)),
        "ln_g": _pad_to(p["ln_g"][None, None, :], (1, 1, HP)),
        "ln_b": _pad_to(p["ln_b"][None, None, :], (1, 1, HP)),
    }


# ----------------------------- main -----------------------------
if __name__ == "__main__":
    key = jax.random.PRNGKey(0)
    pkey, hkey = jax.random.split(key, 2)
    params = init_params(pkey)
    packed = pack_params(params)

    hidden_states = jax.random.normal(hkey, (BATCH, SEQ, HIDDEN), jnp.float32)
    attention_mask = jnp.ones((BATCH, SEQ), jnp.float32)
    attention_mask = attention_mask.at[1, SEQ - 2:].set(0.0)   # some padding on seq 1

    out = momoshare_forward(packed, hidden_states, attention_mask)
    jax.block_until_ready(out)
    assert out.shape == (BATCH, SEQ, HIDDEN) and out.dtype == jnp.float32
    assert bool(jnp.isfinite(out).all())
    print("KERNEL_OK")
</pallas_src>

<mosaic_0001>
module attributes {stable_mosaic.version = 11 : i64} {
  func.func @_momoshare_kernel(%arg0: memref<2x8x128xf32, #tpu.memory_space<vmem>>, %arg1: memref<2x1x8xf32, #tpu.memory_space<vmem>>, %arg2: memref<2x1x128xf32, #tpu.memory_space<vmem>>, %arg3: memref<2x1x1xf32, #tpu.memory_space<vmem>>, %arg4: memref<2x128x384xf32, #tpu.memory_space<vmem>>, %arg5: memref<2x1x384xf32, #tpu.memory_space<vmem>>, %arg6: memref<2x128x128xf32, #tpu.memory_space<vmem>>, %arg7: memref<2x1x128xf32, #tpu.memory_space<vmem>>, %arg8: memref<2x1x128xf32, #tpu.memory_space<vmem>>, %arg9: memref<2x1x128xf32, #tpu.memory_space<vmem>>, %arg10: memref<2x1x128xf32, #tpu.memory_space<vmem>>, %arg11: memref<2x1x1xf32, #tpu.memory_space<vmem>>, %arg12: memref<2x128x128xf32, #tpu.memory_space<vmem>>, %arg13: memref<2x1x128xf32, #tpu.memory_space<vmem>>, %arg14: memref<2x128x128xf32, #tpu.memory_space<vmem>>, %arg15: memref<2x1x128xf32, #tpu.memory_space<vmem>>, %arg16: memref<1x1x128xf32, #tpu.memory_space<vmem>>, %arg17: memref<1x1x128xf32, #tpu.memory_space<vmem>>, %arg18: memref<2x8x128xf32, #tpu.memory_space<vmem>>) attributes {dimension_semantics = [], scalar_prefetch = 0 : i64, scratch_operands = 0 : i64, tpu.core_type = #tpu.core_type<tc>} {
    %c0 = arith.constant 0 : index
    %c0_0 = arith.constant 0 : index
    %c0_1 = arith.constant 0 : index
    %0 = vector.load %arg0[%c0, %c0_0, %c0_1] : memref<2x8x128xf32, #tpu.memory_space<vmem>>, vector<2x8x128xf32>
    %c0_2 = arith.constant 0 : index
    %c0_3 = arith.constant 0 : index
    %c0_4 = arith.constant 0 : index
    %1 = vector.load %arg1[%c0_2, %c0_3, %c0_4] : memref<2x1x8xf32, #tpu.memory_space<vmem>>, vector<2x1x8xf32>
    %cst = arith.constant 1.000000e+00 : f32
    %2 = vector.broadcast %cst : f32 to vector<2x1x8xf32>
    %3 = arith.subf %2, %1 : vector<2x1x8xf32>
    %cst_5 = arith.constant -1.000000e+04 : f32
    %4 = vector.broadcast %cst_5 : f32 to vector<2x1x8xf32>
    %5 = arith.mulf %3, %4 : vector<2x1x8xf32>
    %cst_6 = arith.constant dense<0.000000e+00> : vector<2x128xf32>
    %6 = vector.multi_reduction <add>, %0, %cst_6 [1] : vector<2x8x128xf32> to vector<2x128xf32>
    %cst_7 = arith.constant 8.000000e+00 : f32
    %7 = vector.broadcast %cst_7 : f32 to vector<2x128xf32>
    %8 = arith.divf %6, %7 : vector<2x128xf32>
    %c0_8 = arith.constant 0 : index
    %c0_9 = arith.constant 0 : index
    %c0_10 = arith.constant 0 : index
    %9 = vector.load %arg2[%c0_8, %c0_9, %c0_10] : memref<2x1x128xf32, #tpu.memory_space<vmem>>, vector<1x1x128xf32>
    %10 = vector.shape_cast %9 : vector<1x1x128xf32> to vector<1x128xf32>
    %11 = vector.broadcast %10 : vector<1x128xf32> to vector<2x128xf32>
    %12 = arith.mulf %8, %11 : vector<2x128xf32>
    %cst_11 = arith.constant dense<0.000000e+00> : vector<2xf32>
    %13 = vector.multi_reduction <add>, %12, %cst_11 [1] : vector<2x128xf32> to vector<2xf32>
    %14 = vector.shape_cast %13 : vector<2xf32> to vector<2x1xf32>
    %c0_12 = arith.constant 0 : index
    %c0_13 = arith.constant 0 : index
    %c0_14 = arith.constant 0 : index
    %15 = vector.load %arg3[%c0_12, %c0_13, %c0_14] : memref<2x1x1xf32, #tpu.memory_space<vmem>>, vector<1x1x1xf32>
    %16 = vector.shape_cast %15 : vector<1x1x1xf32> to vector<1x1xf32>
    %17 = vector.broadcast %16 : vector<1x1xf32> to vector<2x1xf32>
    %18 = arith.addf %14, %17 : vector<2x1xf32>
    %c1 = arith.constant 1 : index
    %c0_15 = arith.constant 0 : index
    %c0_16 = arith.constant 0 : index
    %19 = vector.load %arg2[%c1, %c0_15, %c0_16] : memref<2x1x128xf32, #tpu.memory_space<vmem>>, vector<1x1x128xf32>
    %20 = vector.shape_cast %19 : vector<1x1x128xf32> to vector<1x128xf32>
    %21 = vector.broadcast %20 : vector<1x128xf32> to vector<2x128xf32>
    %22 = arith.mulf %8, %21 : vector<2x128xf32>
    %cst_17 = arith.constant dense<0.000000e+00> : vector<2xf32>
    %23 = vector.multi_reduction <add>, %22, %cst_17 [1] : vector<2x128xf32> to vector<2xf32>
    %24 = vector.shape_cast %23 : vector<2xf32> to vector<2x1xf32>
    %c1_18 = arith.constant 1 : index
    %c0_19 = arith.constant 0 : index
    %c0_20 = arith.constant 0 : index
    %25 = vector.load %arg3[%c1_18, %c0_19, %c0_20] : memref<2x1x1xf32, #tpu.memory_space<vmem>>, vector<1x1x1xf32>
    %26 = vector.shape_cast %25 : vector<1x1x1xf32> to vector<1x1xf32>
    %27 = vector.broadcast %26 : vector<1x1xf32> to vector<2x1xf32>
    %28 = arith.addf %24, %27 : vector<2x1xf32>
    %29 = arith.cmpf ogt, %28, %18 : vector<2x1xf32>
    %30 = arith.extui %29 : vector<2x1xi1> to vector<2x1xi32>
    %31 = arith.sitofp %30 : vector<2x1xi32> to vector<2x1xf32>
    %32 = vector.shape_cast %31 : vector<2x1xf32> to vector<2x1x1xf32>
    %cst_21 = arith.constant 1.000000e+00 : f32
    %33 = vector.broadcast %cst_21 : f32 to vector<2x1x1xf32>
    %34 = arith.subf %33, %32 : vector<2x1x1xf32>
    %c0_22 = arith.constant 0 : index
    %c0_23 = arith.constant 0 : index
    %c0_24 = arith.constant 0 : index
    %35 = vector.load %arg4[%c0_22, %c0_23, %c0_24] : memref<2x128x384xf32, #tpu.memory_space<vmem>>, vector<1x128x384xf32>
    %36 = vector.shape_cast %35 : vector<1x128x384xf32> to vector<128x384xf32>
    %cst_25 = arith.constant dense<0.000000e+00> : vector<2x8x384xf32>
    %37 = tpu.matmul %0, %36, %cst_25 {dimension_numbers = #tpu.dot_dimension_numbers<[2], [0], [0, 1], [1], [0, 0, 0, 1, 1, 1], [], []>} : vector<2x8x128xf32>, vector<128x384xf32>, vector<2x8x384xf32> -> vector<2x8x384xf32>
    %c0_26 = arith.constant 0 : index
    %c0_27 = arith.constant 0 : index
    %c0_28 = arith.constant 0 : index
    %38 = vector.load %arg5[%c0_26, %c0_27, %c0_28] : memref<2x1x384xf32, #tpu.memory_space<vmem>>, vector<1x1x384xf32>
    %39 = vector.shape_cast %38 : vector<1x1x384xf32> to vector<1x384xf32>
    %40 = vector.shape_cast %39 : vector<1x384xf32> to vector<1x1x384xf32>
    %41 = vector.broadcast %40 : vector<1x1x384xf32> to vector<2x8x384xf32>
    %42 = arith.addf %37, %41 : vector<2x8x384xf32>
    %c1_29 = arith.constant 1 : index
    %c0_30 = arith.constant 0 : index
    %c0_31 = arith.constant 0 : index
    %43 = vector.load %arg4[%c1_29, %c0_30, %c0_31] : memref<2x128x384xf32, #tpu.memory_space<vmem>>, vector<1x128x384xf32>
    %44 = vector.shape_cast %43 : vector<1x128x384xf32> to vector<128x384xf32>
    %cst_32 = arith.constant dense<0.000000e+00> : vector<2x8x384xf32>
    %45 = tpu.matmul %0, %44, %cst_32 {dimension_numbers = #tpu.dot_dimension_numbers<[2], [0], [0, 1], [1], [0, 0, 0, 1, 1, 1], [], []>} : vector<2x8x128xf32>, vector<128x384xf32>, vector<2x8x384xf32> -> vector<2x8x384xf32>
    %c1_33 = arith.constant 1 : index
    %c0_34 = arith.constant 0 : index
    %c0_35 = arith.constant 0 : index
    %46 = vector.load %arg5[%c1_33, %c0_34, %c0_35] : memref<2x1x384xf32, #tpu.memory_space<vmem>>, vector<1x1x384xf32>
    %47 = vector.shape_cast %46 : vector<1x1x384xf32> to vector<1x384xf32>
    %48 = vector.shape_cast %47 : vector<1x384xf32> to vector<1x1x384xf32>
    %49 = vector.broadcast %48 : vector<1x1x384xf32> to vector<2x8x384xf32>
    %50 = arith.addf %45, %49 : vector<2x8x384xf32>
    %51 = vector.broadcast %34 : vector<2x1x1xf32> to vector<2x8x384xf32>
    %52 = arith.mulf %42, %51 : vector<2x8x384xf32>
    %53 = vector.broadcast %32 : vector<2x1x1xf32> to vector<2x8x384xf32>
    %54 = arith.mulf %50, %53 : vector<2x8x384xf32>
    %55 = arith.addf %52, %54 : vector<2x8x384xf32>
    %56 = vector.extract_strided_slice %55 {offsets = [0, 0, 0], sizes = [2, 8, 128], strides = [1, 1, 1]} : vector<2x8x384xf32> to vector<2x8x128xf32>
    %57 = vector.extract_strided_slice %55 {offsets = [0, 0, 128], sizes = [2, 8, 128], strides = [1, 1, 1]} : vector<2x8x384xf32> to vector<2x8x128xf32>
    %58 = vector.extract_strided_slice %55 {offsets = [0, 0, 256], sizes = [2, 8, 128], strides = [1, 1, 1]} : vector<2x8x384xf32> to vector<2x8x128xf32>
    %59 = tpu.iota {dimensions = array<i32: 2>} : vector<1x1x128xi32>
    %cst_36 = arith.constant 0.000000e+00 : f32
    %60 = vector.broadcast %cst_36 : f32 to vector<2x8x128xf32>
    %c0_i32 = arith.constant 0 : i32
    %61 = vector.broadcast %c0_i32 : i32 to vector<1x1x128xi32>
    %62 = arith.cmpi sge, %59, %61 : vector<1x1x128xi32>
    %c16_i32 = arith.constant 16 : i32
    %63 = vector.broadcast %c16_i32 : i32 to vector<1x1x128xi32>
    %64 = arith.cmpi slt, %59, %63 : vector<1x1x128xi32>
    %65 = arith.andi %62, %64 : vector<1x1x128xi1>
    %66 = arith.extui %65 : vector<1x1x128xi1> to vector<1x1x128xi32>
    %67 = arith.sitofp %66 : vector<1x1x128xi32> to vector<1x1x128xf32>
    %68 = vector.broadcast %67 : vector<1x1x128xf32> to vector<2x8x128xf32>
    %69 = arith.mulf %57, %68 : vector<2x8x128xf32>
    "tpu.trace_start"() <{level = 10 : i32, message = "bqd,bkd->bqk"}> : () -> ()
    %cst_37 = arith.constant dense<0.000000e+00> : vector<2x8x8xf32>
    %70 = tpu.matmul %56, %69, %cst_37 {dimension_numbers = #tpu.dot_dimension_numbers<[2], [2], [1], [1], [0, 0, 0, 1, 1, 1], [0], [0]>} : vector<2x8x128xf32>, vector<2x8x128xf32>, vector<2x8x8xf32> -> vector<2x8x8xf32>
    "tpu.trace_stop"() : () -> ()
    %cst_38 = arith.constant 2.500000e-01 : f32
    %71 = vector.broadcast %cst_38 : f32 to vector<2x8x8xf32>
    %72 = arith.mulf %70, %71 : vector<2x8x8xf32>
    %73 = vector.broadcast %5 : vector<2x1x8xf32> to vector<2x8x8xf32>
    %74 = arith.addf %72, %73 : vector<2x8x8xf32>
    %cst_39 = arith.constant dense<0xFF800000> : vector<2x8xf32>
    %75 = vector.multi_reduction <maximumf>, %74, %cst_39 [2] : vector<2x8x8xf32> to vector<2x8xf32>
    %76 = vector.shape_cast %75 : vector<2x8xf32> to vector<2x8x1xf32>
    %77 = vector.broadcast %76 : vector<2x8x1xf32> to vector<2x8x8xf32>
    %78 = arith.subf %74, %77 : vector<2x8x8xf32>
    %79 = math.exp %78 : vector<2x8x8xf32>
    %cst_40 = arith.constant dense<0.000000e+00> : vector<2x8xf32>
    %80 = vector.multi_reduction <add>, %79, %cst_40 [2] : vector<2x8x8xf32> to vector<2x8xf32>
    %81 = vector.shape_cast %80 : vector<2x8xf32> to vector<2x8x1xf32>
    %82 = tpu.reciprocal %81 {approx = true} : vector<2x8x1xf32> -> vector<2x8x1xf32>
    %83 = vector.broadcast %82 : vector<2x8x1xf32> to vector<2x8x8xf32>
    %84 = arith.mulf %79, %83 : vector<2x8x8xf32>
    %85 = vector.broadcast %67 : vector<1x1x128xf32> to vector<2x8x128xf32>
    %86 = arith.mulf %58, %85 : vector<2x8x128xf32>
    "tpu.trace_start"() <{level = 10 : i32, message = "bqk,bkd->bqd"}> : () -> ()
    %cst_41 = arith.constant dense<0.000000e+00> : vector<2x8x128xf32>
    %87 = tpu.matmul %84, %86, %cst_41 {dimension_numbers = #tpu.dot_dimension_numbers<[2], [1], [1], [2], [0, 0, 0, 1, 1, 2], [0], [0]>} : vector<2x8x8xf32>, vector<2x8x128xf32>, vector<2x8x128xf32> -> vector<2x8x128xf32>
    "tpu.trace_stop"() : () -> ()
    %88 = arith.addf %60, %87 : vector<2x8x128xf32>
    %c16_i32_42 = arith.constant 16 : i32
    %89 = vector.broadcast %c16_i32_42 : i32 to vector<1x1x128xi32>
    %90 = arith.cmpi sge, %59, %89 : vector<1x1x128xi32>
    %c32_i32 = arith.constant 32 : i32
    %91 = vector.broadcast %c32_i32 : i32 to vector<1x1x128xi32>
    %92 = arith.cmpi slt, %59, %91 : vector<1x1x128xi32>
    %93 = arith.andi %90, %92 : vector<1x1x128xi1>
    %94 = arith.extui %93 : vector<1x1x128xi1> to vector<1x1x128xi32>
    %95 = arith.sitofp %94 : vector<1x1x128xi32> to vector<1x1x128xf32>
    %96 = vector.broadcast %95 : vector<1x1x128xf32> to vector<2x8x128xf32>
    %97 = arith.mulf %57, %96 : vector<2x8x128xf32>
    "tpu.trace_start"() <{level = 10 : i32, message = "bqd,bkd->bqk"}> : () -> ()
    %cst_43 = arith.constant dense<0.000000e+00> : vector<2x8x8xf32>
    %98 = tpu.matmul %56, %97, %cst_43 {dimension_numbers = #tpu.dot_dimension_numbers<[2], [2], [1], [1], [0, 0, 0, 1, 1, 1], [0], [0]>} : vector<2x8x128xf32>, vector<2x8x128xf32>, vector<2x8x8xf32> -> vector<2x8x8xf32>
    "tpu.trace_stop"() : () -> ()
    %cst_44 = arith.constant 2.500000e-01 : f32
    %99 = vector.broadcast %cst_44 : f32 to vector<2x8x8xf32>
    %100 = arith.mulf %98, %99 : vector<2x8x8xf32>
    %101 = vector.broadcast %5 : vector<2x1x8xf32> to vector<2x8x8xf32>
    %102 = arith.addf %100, %101 : vector<2x8x8xf32>
    %cst_45 = arith.constant dense<0xFF800000> : vector<2x8xf32>
    %103 = vector.multi_reduction <maximumf>, %102, %cst_45 [2] : vector<2x8x8xf32> to vector<2x8xf32>
    %104 = vector.shape_cast %103 : vector<2x8xf32> to vector<2x8x1xf32>
    %105 = vector.broadcast %104 : vector<2x8x1xf32> to vector<2x8x8xf32>
    %106 = arith.subf %102, %105 : vector<2x8x8xf32>
    %107 = math.exp %106 : vector<2x8x8xf32>
    %cst_46 = arith.constant dense<0.000000e+00> : vector<2x8xf32>
    %108 = vector.multi_reduction <add>, %107, %cst_46 [2] : vector<2x8x8xf32> to vector<2x8xf32>
    %109 = vector.shape_cast %108 : vector<2x8xf32> to vector<2x8x1xf32>
    %110 = tpu.reciprocal %109 {approx = true} : vector<2x8x1xf32> -> vector<2x8x1xf32>
    %111 = vector.broadcast %110 : vector<2x8x1xf32> to vector<2x8x8xf32>
    %112 = arith.mulf %107, %111 : vector<2x8x8xf32>
    %113 = vector.broadcast %95 : vector<1x1x128xf32> to vector<2x8x128xf32>
    %114 = arith.mulf %58, %113 : vector<2x8x128xf32>
    "tpu.trace_start"() <{level = 10 : i32, message = "bqk,bkd->bqd"}> : () -> ()
    %cst_47 = arith.constant dense<0.000000e+00> : vector<2x8x128xf32>
    %115 = tpu.matmul %112, %114, %cst_47 {dimension_numbers = #tpu.dot_dimension_numbers<[2], [1], [1], [2], [0, 0, 0, 1, 1, 2], [0], [0]>} : vector<2x8x8xf32>, vector<2x8x128xf32>, vector<2x8x128xf32> -> vector<2x8x128xf32>
    "tpu.trace_stop"() : () -> ()
    %116 = arith.addf %88, %115 : vector<2x8x128xf32>
    %c0_48 = arith.constant 0 : index
    %c0_49 = arith.constant 0 : index
    %c0_50 = arith.constant 0 : index
    %117 = vector.load %arg6[%c0_48, %c0_49, %c0_50] : memref<2x128x128xf32, #tpu.memory_space<vmem>>, vector<1x128x128xf32>
    %118 = vector.shape_cast %117 : vector<1x128x128xf32> to vector<128x128xf32>
    %cst_51 = arith.constant dense<0.000000e+00> : vector<2x8x128xf32>
    %119 = tpu.matmul %116, %118, %cst_51 {dimension_numbers = #tpu.dot_dimension_numbers<[2], [0], [0, 1], [1], [0, 0, 0, 1, 1, 1], [], []>} : vector<2x8x128xf32>, vector<128x128xf32>, vector<2x8x128xf32> -> vector<2x8x128xf32>
    %c0_52 = arith.constant 0 : index
    %c0_53 = arith.constant 0 : index
    %c0_54 = arith.constant 0 : index
    %120 = vector.load %arg7[%c0_52, %c0_53, %c0_54] : memref<2x1x128xf32, #tpu.memory_space<vmem>>, vector<1x1x128xf32>
    %121 = vector.shape_cast %120 : vector<1x1x128xf32> to vector<1x128xf32>
    %122 = vector.shape_cast %121 : vector<1x128xf32> to vector<1x1x128xf32>
    %123 = vector.broadcast %122 : vector<1x1x128xf32> to vector<2x8x128xf32>
    %124 = arith.addf %119, %123 : vector<2x8x128xf32>
    %c1_55 = arith.constant 1 : index
    %c0_56 = arith.constant 0 : index
    %c0_57 = arith.constant 0 : index
    %125 = vector.load %arg6[%c1_55, %c0_56, %c0_57] : memref<2x128x128xf32, #tpu.memory_space<vmem>>, vector<1x128x128xf32>
    %126 = vector.shape_cast %125 : vector<1x128x128xf32> to vector<128x128xf32>
    %cst_58 = arith.constant dense<0.000000e+00> : vector<2x8x128xf32>
    %127 = tpu.matmul %116, %126, %cst_58 {dimension_numbers = #tpu.dot_dimension_numbers<[2], [0], [0, 1], [1], [0, 0, 0, 1, 1, 1], [], []>} : vector<2x8x128xf32>, vector<128x128xf32>, vector<2x8x128xf32> -> vector<2x8x128xf32>
    %c1_59 = arith.constant 1 : index
    %c0_60 = arith.constant 0 : index
    %c0_61 = arith.constant 0 : index
    %128 = vector.load %arg7[%c1_59, %c0_60, %c0_61] : memref<2x1x128xf32, #tpu.memory_space<vmem>>, vector<1x1x128xf32>
    %129 = vector.shape_cast %128 : vector<1x1x128xf32> to vector<1x128xf32>
    %130 = vector.shape_cast %129 : vector<1x128xf32> to vector<1x1x128xf32>
    %131 = vector.broadcast %130 : vector<1x1x128xf32> to vector<2x8x128xf32>
    %132 = arith.addf %127, %131 : vector<2x8x128xf32>
    %133 = vector.broadcast %34 : vector<2x1x1xf32> to vector<2x8x128xf32>
    %134 = arith.mulf %124, %133 : vector<2x8x128xf32>
    %135 = vector.broadcast %32 : vector<2x1x1xf32> to vector<2x8x128xf32>
    %136 = arith.mulf %132, %135 : vector<2x8x128xf32>
    %137 = arith.addf %134, %136 : vector<2x8x128xf32>
    %138 = arith.addf %137, %0 : vector<2x8x128xf32>
    %c0_62 = arith.constant 0 : index
    %c0_63 = arith.constant 0 : index
    %c0_64 = arith.constant 0 : index
    %139 = vector.load %arg8[%c0_62, %c0_63, %c0_64] : memref<2x1x128xf32, #tpu.memory_space<vmem>>, vector<1x1x128xf32>
    %140 = vector.shape_cast %139 : vector<1x1x128xf32> to vector<1x128xf32>
    %c1_65 = arith.constant 1 : index
    %c0_66 = arith.constant 0 : index
    %c0_67 = arith.constant 0 : index
    %141 = vector.load %arg8[%c1_65, %c0_66, %c0_67] : memref<2x1x128xf32, #tpu.memory_space<vmem>>, vector<1x1x128xf32>
    %142 = vector.shape_cast %141 : vector<1x1x128xf32> to vector<1x128xf32>
    %143 = vector.shape_cast %140 : vector<1x128xf32> to vector<1x1x128xf32>
    %144 = vector.broadcast %143 : vector<1x1x128xf32> to vector<2x1x128xf32>
    %145 = vector.broadcast %34 : vector<2x1x1xf32> to vector<2x1x128xf32>
    %146 = arith.mulf %144, %145 : vector<2x1x128xf32>
    %147 = vector.shape_cast %142 : vector<1x128xf32> to vector<1x1x128xf32>
    %148 = vector.broadcast %147 : vector<1x1x128xf32> to vector<2x1x128xf32>
    %149 = vector.broadcast %32 : vector<2x1x1xf32> to vector<2x1x128xf32>
    %150 = arith.mulf %148, %149 : vector<2x1x128xf32>
    %151 = arith.addf %146, %150 : vector<2x1x128xf32>
    %c0_68 = arith.constant 0 : index
    %c0_69 = arith.constant 0 : index
    %c0_70 = arith.constant 0 : index
    %152 = vector.load %arg9[%c0_68, %c0_69, %c0_70] : memref<2x1x128xf32, #tpu.memory_space<vmem>>, vector<1x1x128xf32>
    %153 = vector.shape_cast %152 : vector<1x1x128xf32> to vector<1x128xf32>
    %c1_71 = arith.constant 1 : index
    %c0_72 = arith.constant 0 : index
    %c0_73 = arith.constant 0 : index
    %154 = vector.load %arg9[%c1_71, %c0_72, %c0_73] : memref<2x1x128xf32, #tpu.memory_space<vmem>>, vector<1x1x128xf32>
    %155 = vector.shape_cast %154 : vector<1x1x128xf32> to vector<1x128xf32>
    %156 = vector.shape_cast %153 : vector<1x128xf32> to vector<1x1x128xf32>
    %157 = vector.broadcast %156 : vector<1x1x128xf32> to vector<2x1x128xf32>
    %158 = vector.broadcast %34 : vector<2x1x1xf32> to vector<2x1x128xf32>
    %159 = arith.mulf %157, %158 : vector<2x1x128xf32>
    %160 = vector.shape_cast %155 : vector<1x128xf32> to vector<1x1x128xf32>
    %161 = vector.broadcast %160 : vector<1x1x128xf32> to vector<2x1x128xf32>
    %162 = vector.broadcast %32 : vector<2x1x1xf32> to vector<2x1x128xf32>
    %163 = arith.mulf %161, %162 : vector<2x1x128xf32>
    %164 = arith.addf %159, %163 : vector<2x1x128xf32>
    %cst_74 = arith.constant dense<0.000000e+00> : vector<2x8xf32>
    %165 = vector.multi_reduction <add>, %138, %cst_74 [2] : vector<2x8x128xf32> to vector<2x8xf32>
    %166 = vector.shape_cast %165 : vector<2x8xf32> to vector<2x8x1xf32>
    %cst_75 = arith.constant 3.125000e-02 : f32
    %167 = vector.broadcast %cst_75 : f32 to vector<2x8x1xf32>
    %168 = arith.mulf %166, %167 : vector<2x8x1xf32>
    %169 = arith.mulf %138, %138 : vector<2x8x128xf32>
    %cst_76 = arith.constant dense<0.000000e+00> : vector<2x8xf32>
    %170 = vector.multi_reduction <add>, %169, %cst_76 [2] : vector<2x8x128xf32> to vector<2x8xf32>
    %171 = vector.shape_cast %170 : vector<2x8xf32> to vector<2x8x1xf32>
    %cst_77 = arith.constant 3.125000e-02 : f32
    %172 = vector.broadcast %cst_77 : f32 to vector<2x8x1xf32>
    %173 = arith.mulf %171, %172 : vector<2x8x1xf32>
    %174 = arith.mulf %168, %168 : vector<2x8x1xf32>
    %175 = arith.subf %173, %174 : vector<2x8x1xf32>
    %176 = vector.broadcast %168 : vector<2x8x1xf32> to vector<2x8x128xf32>
    %177 = arith.subf %138, %176 : vector<2x8x128xf32>
    %cst_78 = arith.constant 9.99999996E-13 : f32
    %178 = vector.broadcast %cst_78 : f32 to vector<2x8x1xf32>
    %179 = arith.addf %175, %178 : vector<2x8x1xf32>
    %180 = math.rsqrt %179 : vector<2x8x1xf32>
    %181 = vector.broadcast %180 : vector<2x8x1xf32> to vector<2x8x128xf32>
    %182 = arith.mulf %177, %181 : vector<2x8x128xf32>
    %183 = vector.broadcast %151 : vector<2x1x128xf32> to vector<2x8x128xf32>
    %184 = arith.mulf %182, %183 : vector<2x8x128xf32>
    %185 = vector.broadcast %164 : vector<2x1x128xf32> to vector<2x8x128xf32>
    %186 = arith.addf %184, %185 : vector<2x8x128xf32>
    %cst_79 = arith.constant dense<0.000000e+00> : vector<2x128xf32>
    %187 = vector.multi_reduction <add>, %186, %cst_79 [1] : vector<2x8x128xf32> to vector<2x128xf32>
    %cst_80 = arith.constant 8.000000e+00 : f32
    %188 = vector.broadcast %cst_80 : f32 to vector<2x128xf32>
    %189 = arith.divf %187, %188 : vector<2x128xf32>
    %c0_81 = arith.constant 0 : index
    %c0_82 = arith.constant 0 : index
    %c0_83 = arith.constant 0 : index
    %190 = vector.load %arg10[%c0_81, %c0_82, %c0_83] : memref<2x1x128xf32, #tpu.memory_space<vmem>>, vector<1x1x128xf32>
    %191 = vector.shape_cast %190 : vector<1x1x128xf32> to vector<1x128xf32>
    %192 = vector.broadcast %191 : vector<1x128xf32> to vector<2x128xf32>
    %193 = arith.mulf %189, %192 : vector<2x128xf32>
    %cst_84 = arith.constant dense<0.000000e+00> : vector<2xf32>
    %194 = vector.multi_reduction <add>, %193, %cst_84 [1] : vector<2x128xf32> to vector<2xf32>
    %195 = vector.shape_cast %194 : vector<2xf32> to vector<2x1xf32>
    %c0_85 = arith.constant 0 : index
    %c0_86 = arith.constant 0 : index
    %c0_87 = arith.constant 0 : index
    %196 = vector.load %arg11[%c0_85, %c0_86, %c0_87] : memref<2x1x1xf32, #tpu.memory_space<vmem>>, vector<1x1x1xf32>
    %197 = vector.shape_cast %196 : vector<1x1x1xf32> to vector<1x1xf32>
    %198 = vector.broadcast %197 : vector<1x1xf32> to vector<2x1xf32>
    %199 = arith.addf %195, %198 : vector<2x1xf32>
    %c1_88 = arith.constant 1 : index
    %c0_89 = arith.constant 0 : index
    %c0_90 = arith.constant 0 : index
    %200 = vector.load %arg10[%c1_88, %c0_89, %c0_90] : memref<2x1x128xf32, #tpu.memory_space<vmem>>, vector<1x1x128xf32>
    %201 = vector.shape_cast %200 : vector<1x1x128xf32> to vector<1x128xf32>
    %202 = vector.broadcast %201 : vector<1x128xf32> to vector<2x128xf32>
    %203 = arith.mulf %189, %202 : vector<2x128xf32>
    %cst_91 = arith.constant dense<0.000000e+00> : vector<2xf32>
    %204 = vector.multi_reduction <add>, %203, %cst_91 [1] : vector<2x128xf32> to vector<2xf32>
    %205 = vector.shape_cast %204 : vector<2xf32> to vector<2x1xf32>
    %c1_92 = arith.constant 1 : index
    %c0_93 = arith.constant 0 : index
    %c0_94 = arith.constant 0 : index
    %206 = vector.load %arg11[%c1_92, %c0_93, %c0_94] : memref<2x1x1xf32, #tpu.memory_space<vmem>>, vector<1x1x1xf32>
    %207 = vector.shape_cast %206 : vector<1x1x1xf32> to vector<1x1xf32>
    %208 = vector.broadcast %207 : vector<1x1xf32> to vector<2x1xf32>
    %209 = arith.addf %205, %208 : vector<2x1xf32>
    %210 = arith.cmpf ogt, %209, %199 : vector<2x1xf32>
    %211 = arith.extui %210 : vector<2x1xi1> to vector<2x1xi32>
    %212 = arith.sitofp %211 : vector<2x1xi32> to vector<2x1xf32>
    %213 = vector.shape_cast %212 : vector<2x1xf32> to vector<2x1x1xf32>
    %cst_95 = arith.constant 1.000000e+00 : f32
    %214 = vector.broadcast %cst_95 : f32 to vector<2x1x1xf32>
    %215 = arith.subf %214, %213 : vector<2x1x1xf32>
    %c0_96 = arith.constant 0 : index
    %c0_97 = arith.constant 0 : index
    %c0_98 = arith.constant 0 : index
    %216 = vector.load %arg12[%c0_96, %c0_97, %c0_98] : memref<2x128x128xf32, #tpu.memory_space<vmem>>, vector<1x128x128xf32>
    %217 = vector.shape_cast %216 : vector<1x128x128xf32> to vector<128x128xf32>
    %cst_99 = arith.constant dense<0.000000e+00> : vector<2x8x128xf32>
    %218 = tpu.matmul %186, %217, %cst_99 {dimension_numbers = #tpu.dot_dimension_numbers<[2], [0], [0, 1], [1], [0, 0, 0, 1, 1, 1], [], []>} : vector<2x8x128xf32>, vector<128x128xf32>, vector<2x8x128xf32> -> vector<2x8x128xf32>
    %c0_100 = arith.constant 0 : index
    %c0_101 = arith.constant 0 : index
    %c0_102 = arith.constant 0 : index
    %219 = vector.load %arg13[%c0_100, %c0_101, %c0_102] : memref<2x1x128xf32, #tpu.memory_space<vmem>>, vector<1x1x128xf32>
    %220 = vector.shape_cast %219 : vector<1x1x128xf32> to vector<1x128xf32>
    %221 = vector.shape_cast %220 : vector<1x128xf32> to vector<1x1x128xf32>
    %222 = vector.broadcast %221 : vector<1x1x128xf32> to vector<2x8x128xf32>
    %223 = arith.addf %218, %222 : vector<2x8x128xf32>
    %224 = arith.mulf %223, %223 : vector<2x8x128xf32>
    %225 = arith.mulf %223, %224 : vector<2x8x128xf32>
    %cst_103 = arith.constant 4.471500e-02 : f32
    %226 = vector.broadcast %cst_103 : f32 to vector<2x8x128xf32>
    %227 = arith.mulf %226, %225 : vector<2x8x128xf32>
    %228 = arith.addf %223, %227 : vector<2x8x128xf32>
    %cst_104 = arith.constant 0.797884583 : f32
    %229 = vector.broadcast %cst_104 : f32 to vector<2x8x128xf32>
    %230 = arith.mulf %229, %228 : vector<2x8x128xf32>
    %231 = math.tanh %230 : vector<2x8x128xf32>
    %cst_105 = arith.constant 1.000000e+00 : f32
    %232 = vector.broadcast %cst_105 : f32 to vector<2x8x128xf32>
    %233 = arith.addf %232, %231 : vector<2x8x128xf32>
    %cst_106 = arith.constant 5.000000e-01 : f32
    %234 = vector.broadcast %cst_106 : f32 to vector<2x8x128xf32>
    %235 = arith.mulf %234, %233 : vector<2x8x128xf32>
    %236 = arith.mulf %223, %235 : vector<2x8x128xf32>
    %c1_107 = arith.constant 1 : index
    %c0_108 = arith.constant 0 : index
    %c0_109 = arith.constant 0 : index
    %237 = vector.load %arg12[%c1_107, %c0_108, %c0_109] : memref<2x128x128xf32, #tpu.memory_space<vmem>>, vector<1x128x128xf32>
    %238 = vector.shape_cast %237 : vector<1x128x128xf32> to vector<128x128xf32>
    %cst_110 = arith.constant dense<0.000000e+00> : vector<2x8x128xf32>
    %239 = tpu.matmul %186, %238, %cst_110 {dimension_numbers = #tpu.dot_dimension_numbers<[2], [0], [0, 1], [1], [0, 0, 0, 1, 1, 1], [], []>} : vector<2x8x128xf32>, vector<128x128xf32>, vector<2x8x128xf32> -> vector<2x8x128xf32>
    %c1_111 = arith.constant 1 : index
    %c0_112 = arith.constant 0 : index
    %c0_113 = arith.constant 0 : index
    %240 = vector.load %arg13[%c1_111, %c0_112, %c0_113] : memref<2x1x128xf32, #tpu.memory_space<vmem>>, vector<1x1x128xf32>
    %241 = vector.shape_cast %240 : vector<1x1x128xf32> to vector<1x128xf32>
    %242 = vector.shape_cast %241 : vector<1x128xf32> to vector<1x1x128xf32>
    %243 = vector.broadcast %242 : vector<1x1x128xf32> to vector<2x8x128xf32>
    %244 = arith.addf %239, %243 : vector<2x8x128xf32>
    %245 = arith.mulf %244, %244 : vector<2x8x128xf32>
    %246 = arith.mulf %244, %245 : vector<2x8x128xf32>
    %cst_114 = arith.constant 4.471500e-02 : f32
    %247 = vector.broadcast %cst_114 : f32 to vector<2x8x128xf32>
    %248 = arith.mulf %247, %246 : vector<2x8x128xf32>
    %249 = arith.addf %244, %248 : vector<2x8x128xf32>
    %cst_115 = arith.constant 0.797884583 : f32
    %250 = vector.broadcast %cst_115 : f32 to vector<2x8x128xf32>
    %251 = arith.mulf %250, %249 : vector<2x8x128xf32>
    %252 = math.tanh %251 : vector<2x8x128xf32>
    %cst_116 = arith.constant 1.000000e+00 : f32
    %253 = vector.broadcast %cst_116 : f32 to vector<2x8x128xf32>
    %254 = arith.addf %253, %252 : vector<2x8x128xf32>
    %cst_117 = arith.constant 5.000000e-01 : f32
    %255 = vector.broadcast %cst_117 : f32 to vector<2x8x128xf32>
    %256 = arith.mulf %255, %254 : vector<2x8x128xf32>
    %257 = arith.mulf %244, %256 : vector<2x8x128xf32>
    %c0_118 = arith.constant 0 : index
    %c0_119 = arith.constant 0 : index
    %c0_120 = arith.constant 0 : index
    %258 = vector.load %arg14[%c0_118, %c0_119, %c0_120] : memref<2x128x128xf32, #tpu.memory_space<vmem>>, vector<1x128x128xf32>
    %259 = vector.shape_cast %258 : vector<1x128x128xf32> to vector<128x128xf32>
    %cst_121 = arith.constant dense<0.000000e+00> : vector<2x8x128xf32>
    %260 = tpu.matmul %236, %259, %cst_121 {dimension_numbers = #tpu.dot_dimension_numbers<[2], [0], [0, 1], [1], [0, 0, 0, 1, 1, 1], [], []>} : vector<2x8x128xf32>, vector<128x128xf32>, vector<2x8x128xf32> -> vector<2x8x128xf32>
    %c0_122 = arith.constant 0 : index
    %c0_123 = arith.constant 0 : index
    %c0_124 = arith.constant 0 : index
    %261 = vector.load %arg15[%c0_122, %c0_123, %c0_124] : memref<2x1x128xf32, #tpu.memory_space<vmem>>, vector<1x1x128xf32>
    %262 = vector.shape_cast %261 : vector<1x1x128xf32> to vector<1x128xf32>
    %263 = vector.shape_cast %262 : vector<1x128xf32> to vector<1x1x128xf32>
    %264 = vector.broadcast %263 : vector<1x1x128xf32> to vector<2x8x128xf32>
    %265 = arith.addf %260, %264 : vector<2x8x128xf32>
    %c1_125 = arith.constant 1 : index
    %c0_126 = arith.constant 0 : index
    %c0_127 = arith.constant 0 : index
    %266 = vector.load %arg14[%c1_125, %c0_126, %c0_127] : memref<2x128x128xf32, #tpu.memory_space<vmem>>, vector<1x128x128xf32>
    %267 = vector.shape_cast %266 : vector<1x128x128xf32> to vector<128x128xf32>
    %cst_128 = arith.constant dense<0.000000e+00> : vector<2x8x128xf32>
    %268 = tpu.matmul %257, %267, %cst_128 {dimension_numbers = #tpu.dot_dimension_numbers<[2], [0], [0, 1], [1], [0, 0, 0, 1, 1, 1], [], []>} : vector<2x8x128xf32>, vector<128x128xf32>, vector<2x8x128xf32> -> vector<2x8x128xf32>
    %c1_129 = arith.constant 1 : index
    %c0_130 = arith.constant 0 : index
    %c0_131 = arith.constant 0 : index
    %269 = vector.load %arg15[%c1_129, %c0_130, %c0_131] : memref<2x1x128xf32, #tpu.memory_space<vmem>>, vector<1x1x128xf32>
    %270 = vector.shape_cast %269 : vector<1x1x128xf32> to vector<1x128xf32>
    %271 = vector.shape_cast %270 : vector<1x128xf32> to vector<1x1x128xf32>
    %272 = vector.broadcast %271 : vector<1x1x128xf32> to vector<2x8x128xf32>
    %273 = arith.addf %268, %272 : vector<2x8x128xf32>
    %274 = vector.broadcast %215 : vector<2x1x1xf32> to vector<2x8x128xf32>
    %275 = arith.mulf %265, %274 : vector<2x8x128xf32>
    %276 = vector.broadcast %213 : vector<2x1x1xf32> to vector<2x8x128xf32>
    %277 = arith.mulf %273, %276 : vector<2x8x128xf32>
    %278 = arith.addf %275, %277 : vector<2x8x128xf32>
    %279 = arith.addf %186, %278 : vector<2x8x128xf32>
    %c0_132 = arith.constant 0 : index
    %c0_133 = arith.constant 0 : index
    %c0_134 = arith.constant 0 : index
    %280 = vector.load %arg16[%c0_132, %c0_133, %c0_134] : memref<1x1x128xf32, #tpu.memory_space<vmem>>, vector<1x1x128xf32>
    %c0_135 = arith.constant 0 : index
    %c0_136 = arith.constant 0 : index
    %c0_137 = arith.constant 0 : index
    %281 = vector.load %arg17[%c0_135, %c0_136, %c0_137] : memref<1x1x128xf32, #tpu.memory_space<vmem>>, vector<1x1x128xf32>
    %cst_138 = arith.constant dense<0.000000e+00> : vector<2x8xf32>
    %282 = vector.multi_reduction <add>, %279, %cst_138 [2] : vector<2x8x128xf32> to vector<2x8xf32>
    %283 = vector.shape_cast %282 : vector<2x8xf32> to vector<2x8x1xf32>
    %cst_139 = arith.constant 3.125000e-02 : f32
    %284 = vector.broadcast %cst_139 : f32 to vector<2x8x1xf32>
    %285 = arith.mulf %283, %284 : vector<2x8x1xf32>
    %286 = arith.mulf %279, %279 : vector<2x8x128xf32>
    %cst_140 = arith.constant dense<0.000000e+00> : vector<2x8xf32>
    %287 = vector.multi_reduction <add>, %286, %cst_140 [2] : vector<2x8x128xf32> to vector<2x8xf32>
    %288 = vector.shape_cast %287 : vector<2x8xf32> to vector<2x8x1xf32>
    %cst_141 = arith.constant 3.125000e-02 : f32
    %289 = vector.broadcast %cst_141 : f32 to vector<2x8x1xf32>
    %290 = arith.mulf %288, %289 : vector<2x8x1xf32>
    %291 = arith.mulf %285, %285 : vector<2x8x1xf32>
    %292 = arith.subf %290, %291 : vector<2x8x1xf32>
    %293 = vector.broadcast %285 : vector<2x8x1xf32> to vector<2x8x128xf32>
    %294 = arith.subf %279, %293 : vector<2x8x128xf32>
    %cst_142 = arith.constant 9.99999996E-13 : f32
    %295 = vector.broadcast %cst_142 : f32 to vector<2x8x1xf32>
    %296 = arith.addf %292, %295 : vector<2x8x1xf32>
    %297 = math.rsqrt %296 : vector<2x8x1xf32>
    %298 = vector.broadcast %297 : vector<2x8x1xf32> to vector<2x8x128xf32>
    %299 = arith.mulf %294, %298 : vector<2x8x128xf32>
    %300 = vector.broadcast %280 : vector<1x1x128xf32> to vector<2x8x128xf32>
    %301 = arith.mulf %299, %300 : vector<2x8x128xf32>
    %302 = vector.broadcast %281 : vector<1x1x128xf32> to vector<2x8x128xf32>
    %303 = arith.addf %301, %302 : vector<2x8x128xf32>
    %c0_143 = arith.constant 0 : index
    %c0_144 = arith.constant 0 : index
    %c0_145 = arith.constant 0 : index
    %304 = vector.load %arg18[%c0_143, %c0_144, %c0_145] : memref<2x8x128xf32, #tpu.memory_space<vmem>>, vector<2x8x128xf32>
    tpu.vector_store %arg18[%c0_143, %c0_144, %c0_145], %303 {strides = array<i32>} : memref<2x8x128xf32, #tpu.memory_space<vmem>>, vector<2x8x128xf32>,
    return
  }
}

</mosaic_0001>

<llo_original>
// kernel: momoshare_forward.1
$region0: #{momoshare_forward.1}
  #allocation0 [shape = 'u32[]', space=smem, size = 0x4, offset = 0x4, fixed_abs, tag = 'smem constant byte address 0x4 - core index']
  #allocation1 [shape = 'u32[72,128]{1,0:T(1,128)}', space=vmem, size = 0x9000, scoped, tag = 'internal scratch']
  %s0 = inlined_call_operand.vmem [shape: f32[2,8,128], index: 0, kind: input, shape index: {}]
  %s1 = inlined_call_operand.vmem [shape: f32[2,1,8], index: 1, kind: input, shape index: {}]
  %s2 = inlined_call_operand.vmem [shape: f32[2,1,128], index: 2, kind: input, shape index: {}]
  %s3 = inlined_call_operand.vmem [shape: f32[2,1,1], index: 3, kind: input, shape index: {}]
  %s4 = inlined_call_operand.hbm [shape: f32[2,128,384], index: 4, kind: input, shape index: {}]
  %s5 = inlined_call_operand.vmem [shape: f32[2,1,384], index: 5, kind: input, shape index: {}]
  %s6 = inlined_call_operand.hbm [shape: f32[2,128,128], index: 6, kind: input, shape index: {}]
  %s7 = inlined_call_operand.vmem [shape: f32[2,1,128], index: 7, kind: input, shape index: {}]
  %s8 = inlined_call_operand.vmem [shape: f32[2,1,128], index: 8, kind: input, shape index: {}]
  %s9 = inlined_call_operand.vmem [shape: f32[2,1,128], index: 9, kind: input, shape index: {}]
  %s10 = inlined_call_operand.vmem [shape: f32[2,1,128], index: 10, kind: input, shape index: {}]
  %s11 = inlined_call_operand.vmem [shape: f32[2,1,1], index: 11, kind: input, shape index: {}]
  %s12 = inlined_call_operand.hbm [shape: f32[2,128,128], index: 12, kind: input, shape index: {}]
  %s13 = inlined_call_operand.vmem [shape: f32[2,1,128], index: 13, kind: input, shape index: {}]
  %s14 = inlined_call_operand.hbm [shape: f32[2,128,128], index: 14, kind: input, shape index: {}]
  %s15 = inlined_call_operand.vmem [shape: f32[2,1,128], index: 15, kind: input, shape index: {}]
  %s16 = inlined_call_operand.vmem [shape: f32[1,1,128], index: 16, kind: input, shape index: {}]
  %s17 = inlined_call_operand.vmem [shape: f32[1,1,128], index: 17, kind: input, shape index: {}]
  %s18 = inlined_call_operand.hbm [shape: f32[2,8,128], index: 18, kind: output, shape index: {}]
  %s19 = sld [smem:[#allocation0]]
  $region98: #{momoshare_forward.1} parent=0
    _
  %s21 = ssub.s32 1, %s19
  %s22 = scalar_select 0, %s21, %s19
  $region1: #{momoshare_forward.1} parent=0
    #allocation2 [shape = 'u8[393216]{0}', space=vmem, size = 0x60000, scoped, tag = 'input window, operand 4, single buffered']
    #allocation3 [shape = 's32[1]{0}', space=sflag, size = 0x4, scoped, tag = 'scoped memory for momoshare_forward.1']
    #allocation4 [shape = 's32[1]{0}', space=sflag, size = 0x4, scoped, tag = 'scoped memory for momoshare_forward.1']
    #allocation5 [shape = 'u8[131072]{0}', space=vmem, size = 0x20000, scoped, tag = 'input window, operand 6, single buffered']
    #allocation6 [shape = 's32[1]{0}', space=sflag, size = 0x4, scoped, tag = 'scoped memory for momoshare_forward.1']
    #allocation7 [shape = 'u8[131072]{0}', space=vmem, size = 0x20000, scoped, tag = 'input window, operand 12, single buffered']
    #allocation8 [shape = 'u8[131072]{0}', space=vmem, size = 0x20000, scoped, tag = 'input window, operand 14, single buffered']
    #allocation9 [shape = 's32[1]{0}', space=sflag, size = 0x4, scoped, tag = 'scoped memory for momoshare_forward.1']
    #allocation10 [shape = 'u8[8192]{0}', space=vmem, size = 0x2000, scoped, tag = 'output window, operand 0, single buffered']
    %23 = vsyncpa [#allocation3], 0
    %24 = vsyncpa [#allocation6], 0
    %25 = vsyncpa [#allocation9], 0
    %26 = vsyncpa [#allocation4], 0
    // Predicated region
    $region2: #{momoshare_forward.1} parent=1 // pred_check
      _
    $region3: #{momoshare_forward.1} parent=1 // pred_check_branch
      %28 = sbr.rel (0) target = $region5
    $region4: #{momoshare_forward.1} parent=1 // pred_region
      _
    $region5: #{momoshare_forward.1} parent=1 // pred_fallthru
      _
    // Predicated region
    $region6: #{momoshare_forward.1} parent=1 // pred_check
      _
    $region7: #{momoshare_forward.1} parent=1 // pred_check_branch
      %30 = sbr.rel (0) target = $region9
    $region8: #{momoshare_forward.1} parent=1 // pred_region
      _
    $region9: #{momoshare_forward.1} parent=1 // pred_fallthru
      _
    // Predicated region
    $region10: #{momoshare_forward.1} parent=1 // pred_check
      _
    $region11: #{momoshare_forward.1} parent=1 // pred_check_branch
      %32 = sbr.rel (0) target = $region13
    $region12: #{momoshare_forward.1} parent=1 // pred_region
      _
    $region13: #{momoshare_forward.1} parent=1 // pred_fallthru
      _
    // Predicated region
    $region14: #{momoshare_forward.1} parent=1 // pred_check
      _
    $region15: #{momoshare_forward.1} parent=1 // pred_check_branch
      %34 = sbr.rel (0) target = $region17
    $region16: #{momoshare_forward.1} parent=1 // pred_region
      _
    $region17: #{momoshare_forward.1} parent=1 // pred_fallthru
      _
    // Predicated region
    $region18: #{momoshare_forward.1} parent=1 // pred_check
      _
    $region19: #{momoshare_forward.1} parent=1 // pred_check_branch
      %36 = sbr.rel (0) target = $region21
    $region20: #{momoshare_forward.1} parent=1 // pred_region
      %38 = vsyncadd [#allocation3], 0
      %s39 = sshll.u32 %s4, 4
      %s40 = int_to_ptr.hbm [resolvable:$true] %s39
      %s41 = sshll.u32 [#allocation2], 4
      %s42 = int_to_ptr.vmem [resolvable:$true] %s41
      %47 = dma.hbm_to_vmem [thread:$0]  %s40, 12288, %s42, [#allocation3], 384, 384, 24
    $region21: #{momoshare_forward.1} parent=1 // pred_fallthru
      _
    // Predicated region
    $region22: #{momoshare_forward.1} parent=1 // pred_check
      _
    $region23: #{momoshare_forward.1} parent=1 // pred_check_branch
      %49 = sbr.rel (0) target = $region25
    $region24: #{momoshare_forward.1} parent=1 // pred_region
      _
    $region25: #{momoshare_forward.1} parent=1 // pred_fallthru
      _
    // Predicated region
    $region26: #{momoshare_forward.1} parent=1 // pred_check
      _
    $region27: #{momoshare_forward.1} parent=1 // pred_check_branch
      %51 = sbr.rel (0) target = $region29
    $region28: #{momoshare_forward.1} parent=1 // pred_region
      %53 = vsyncadd [#allocation6], 0
      %s54 = sshll.u32 %s6, 4
      %s55 = int_to_ptr.hbm [resolvable:$true] %s54
      %s56 = sshll.u32 [#allocation5], 4
      %s57 = int_to_ptr.vmem [resolvable:$true] %s56
      %62 = dma.hbm_to_vmem [thread:$0]  %s55, 4096, %s57, [#allocation6], 128, 128, 8
    $region29: #{momoshare_forward.1} parent=1 // pred_fallthru
      _
    // Predicated region
    $region30: #{momoshare_forward.1} parent=1 // pred_check
      _
    $region31: #{momoshare_forward.1} parent=1 // pred_check_branch
      %64 = sbr.rel (0) target = $region33
    $region32: #{momoshare_forward.1} parent=1 // pred_region
      _
    $region33: #{momoshare_forward.1} parent=1 // pred_fallthru
      _
    // Predicated region
    $region34: #{momoshare_forward.1} parent=1 // pred_check
      _
    $region35: #{momoshare_forward.1} parent=1 // pred_check_branch
      %66 = sbr.rel (0) target = $region37
    $region36: #{momoshare_forward.1} parent=1 // pred_region
      _
    $region37: #{momoshare_forward.1} parent=1 // pred_fallthru
      _
    // Predicated region
    $region38: #{momoshare_forward.1} parent=1 // pred_check
      _
    $region39: #{momoshare_forward.1} parent=1 // pred_check_branch
      %68 = sbr.rel (0) target = $region41
    $region40: #{momoshare_forward.1} parent=1 // pred_region
      _
    $region41: #{momoshare_forward.1} parent=1 // pred_fallthru
      _
    // Predicated region
    $region42: #{momoshare_forward.1} parent=1 // pred_check
      _
    $region43: #{momoshare_forward.1} parent=1 // pred_check_branch
      %70 = sbr.rel (0) target = $region45
    $region44: #{momoshare_forward.1} parent=1 // pred_region
      _
    $region45: #{momoshare_forward.1} parent=1 // pred_fallthru
      _
    // Predicated region
    $region46: #{momoshare_forward.1} parent=1 // pred_check
      _
    $region47: #{momoshare_forward.1} parent=1 // pred_check_branch
      %72 = sbr.rel (0) target = $region49
    $region48: #{momoshare_forward.1} parent=1 // pred_region
      _
    $region49: #{momoshare_forward.1} parent=1 // pred_fallthru
      _
    // Predicated region
    $region50: #{momoshare_forward.1} parent=1 // pred_check
      _
    $region51: #{momoshare_forward.1} parent=1 // pred_check_branch
      %74 = sbr.rel (0) target = $region53
    $region52: #{momoshare_forward.1} parent=1 // pred_region
      %76 = vsyncadd [#allocation6], 0
      %s77 = sshll.u32 %s12, 4
      %s78 = int_to_ptr.hbm [resolvable:$true] %s77
      %s79 = sshll.u32 [#allocation7], 4
      %s80 = int_to_ptr.vmem [resolvable:$true] %s79
      %85 = dma.hbm_to_vmem [thread:$0]  %s78, 4096, %s80, [#allocation6], 128, 128, 8
    $region53: #{momoshare_forward.1} parent=1 // pred_fallthru
      _
    // Predicated region
    $region54: #{momoshare_forward.1} parent=1 // pred_check
      _
    $region55: #{momoshare_forward.1} parent=1 // pred_check_branch
      %87 = sbr.rel (0) target = $region57
    $region56: #{momoshare_forward.1} parent=1 // pred_region
      _
    $region57: #{momoshare_forward.1} parent=1 // pred_fallthru
      _
    // Predicated region
    $region58: #{momoshare_forward.1} parent=1 // pred_check
      _
    $region59: #{momoshare_forward.1} parent=1 // pred_check_branch
      %89 = sbr.rel (0) target = $region61
    $region60: #{momoshare_forward.1} parent=1 // pred_region
      %91 = vsyncadd [#allocation9], 0
      %s92 = sshll.u32 %s14, 4
      %s93 = int_to_ptr.hbm [resolvable:$true] %s92
      %s94 = sshll.u32 [#allocation8], 4
      %s95 = int_to_ptr.vmem [resolvable:$true] %s94
      %100 = dma.hbm_to_vmem [thread:$0]  %s93, 4096, %s95, [#allocation9], 128, 128, 8
    $region61: #{momoshare_forward.1} parent=1 // pred_fallthru
      _
    // Predicated region
    $region62: #{momoshare_forward.1} parent=1 // pred_check
      _
    $region63: #{momoshare_forward.1} parent=1 // pred_check_branch
      %102 = sbr.rel (0) target = $region65
    $region64: #{momoshare_forward.1} parent=1 // pred_region
      _
    $region65: #{momoshare_forward.1} parent=1 // pred_fallthru
      _
    // Predicated region
    $region66: #{momoshare_forward.1} parent=1 // pred_check
      _
    $region67: #{momoshare_forward.1} parent=1 // pred_check_branch
      %104 = sbr.rel (0) target = $region69
    $region68: #{momoshare_forward.1} parent=1 // pred_region
      _
    $region69: #{momoshare_forward.1} parent=1 // pred_fallthru
      _
    // Predicated region
    $region70: #{momoshare_forward.1} parent=1 // pred_check
      _
    $region71: #{momoshare_forward.1} parent=1 // pred_check_branch
      %106 = sbr.rel (0) target = $region73
    $region72: #{momoshare_forward.1} parent=1 // pred_region
      _
    $region73: #{momoshare_forward.1} parent=1 // pred_fallthru
      _
    // Predicated region
    $region74: #{momoshare_forward.1} parent=1 // pred_check
      _
    $region75: #{momoshare_forward.1} parent=1 // pred_check_branch
      %108 = sbr.rel (0) target = $region77
    $region76: #{momoshare_forward.1} parent=1 // pred_region
      %110 = dma.done [#allocation3], 12288
    $region77: #{momoshare_forward.1} parent=1 // pred_fallthru
      _
    // Predicated region
    $region78: #{momoshare_forward.1} parent=1 // pred_check
      _
    $region79: #{momoshare_forward.1} parent=1 // pred_check_branch
      %112 = sbr.rel (0) target = $region81
    $region80: #{momoshare_forward.1} parent=1 // pred_region
      %114 = dma.done [#allocation6], 4096
    $region81: #{momoshare_forward.1} parent=1 // pred_fallthru
      _
    // Predicated region
    $region82: #{momoshare_forward.1} parent=1 // pred_check
      _
    $region83: #{momoshare_forward.1} parent=1 // pred_check_branch
      %116 = sbr.rel (0) target = $region85
    $region84: #{momoshare_forward.1} parent=1 // pred_region
      %118 = dma.done [#allocation6], 4096
    $region85: #{momoshare_forward.1} parent=1 // pred_fallthru
      _
    // Predicated region
    $region86: #{momoshare_forward.1} parent=1 // pred_check
      _
    $region87: #{momoshare_forward.1} parent=1 // pred_check_branch
      %120 = sbr.rel (0) target = $region89
    $region88: #{momoshare_forward.1} parent=1 // pred_region
      %122 = dma.done [#allocation9], 4096
    $region89: #{momoshare_forward.1} parent=1 // pred_fallthru
      _
    %v123 = vld [vmem:[%s0] sm:$0xff]
    %v124 = vld [vmem:[%s0 + $0x8] sm:$0xff]
    %v125 = vld [vmem:[%s1] sm:$0x1]
    %v126 = vld [vmem:[%s1 + $0x1] sm:$0x1]
    %v127 = vsub.f32 1.0, %v125
    %v128 = vsub.f32 1.0, %v126
    %v129 = vmul.f32 %v127, -10000.0
    %v130 = vmul.f32 %v128, -10000.0
    %v131 = vrot.slane %v123, 4
    %v132 = vadd.f32 %v123, %v131
    %v133 = vrot.slane %v132, 2
    %v134 = vadd.f32 %v132, %v133
    %v135 = vrot.slane %v134, 1
    %v136 = vadd.f32 %v134, %v135
    %v137 = vrot.slane %v124, 4
    %v138 = vadd.f32 %v124, %v137
    %v139 = vrot.slane %v138, 2
    %v140 = vadd.f32 %v138, %v139
    %v141 = vrot.slane %v140, 1
    %v142 = vadd.f32 %v140, %v141
    %v143 = vrcp.pop 8.0
    %v144 = vmul.f32 8.0, %v143
    %v145 = vsub.f32 1.0, %v144
    %v146 = vmul.f32 %v143, %v145
    %v147 = vadd.f32 %v143, %v146
    %vm148 = vweird.f32 %v143
    %v149 = vsel %vm148, %v143, %v147
    %v150 = vmul.f32 %v136, %v149
    %v151 = vmul.f32 %v142, %v149
    %v152 = vld [vmem:[%s2] sm:$0x1]
    %v154 = vperm.slane %v152, 0
    %v156 = vmul.f32 %v150, %v154
    %v157 = vmul.f32 %v151, %v154
    %v160 = vrot.slane %v157, 7
    %vm161 = vcmask 1041409
    %v162 = vsel %vm161, %v160, %v156
    %vm164 = vcmask 1041408
    %v165 = vsel %vm164, %v162, 0.0
    %166 = vadd.xlane.f32.xlu0 %v165
    %v167 = vpop.xlane.xlu0 %166
    %v168 = vld [vmem:[%s3] sm:$0x1]
    %v170 = vperm.slane %v168, 0
    %v172 = vadd.f32 %v167, %v170
    %s173 = scalar_lea.vmem %s2, 1
    %v174 = vld [vmem:[%s173] sm:$0x1]
    %v176 = vperm.slane %v174, 0
    %v178 = vmul.f32 %v150, %v176
    %v179 = vmul.f32 %v151, %v176
    %v182 = vrot.slane %v179, 7
    %v183 = vsel %vm161, %v182, %v178
    %v185 = vsel %vm164, %v183, 0.0
    %186 = vadd.xlane.f32.xlu0 %v185
    %v187 = vpop.xlane.xlu0 %186
    %s188 = scalar_lea.vmem %s3, 1
    %v189 = vld [vmem:[%s188] sm:$0x1]
    %v191 = vperm.slane %v189, 0
    %v193 = vadd.f32 %v187, %v191
    %vm194 = vcmp.gt.f32.partialorder %v193, %v172
    %v195 = vsel %vm194, 1, 0
    %v196 = vcvt.s32.f32 %v195
    %v198 = vrot.slane %v196, 1
    %v200 = vsub.f32 1.0, %v196
    %v201 = vsub.f32 1.0, %v198
    %v202 = vld [vmem:[#allocation2] sm:$0xff]
    %v203 = vld [vmem:[#allocation2 + $0x8] sm:$0xff]
    %v204 = vld [vmem:[#allocation2 + $0x10] sm:$0xff]
    %v205 = vld [vmem:[#allocation2 + $0x18] sm:$0xff]
    %v206 = vld [vmem:[#allocation2 + $0x20] sm:$0xff]
    %v207 = vld [vmem:[#allocation2 + $0x28] sm:$0xff]
    %v208 = vld [vmem:[#allocation2 + $0x30] sm:$0xff]
    %v209 = vld [vmem:[#allocation2 + $0x38] sm:$0xff]
    %v210 = vld [vmem:[#allocation2 + $0x40] sm:$0xff]
    %v211 = vld [vmem:[#allocation2 + $0x48] sm:$0xff]
    %v212 = vld [vmem:[#allocation2 + $0x50] sm:$0xff]
    %v213 = vld [vmem:[#allocation2 + $0x58] sm:$0xff]
    %v214 = vld [vmem:[#allocation2 + $0x60] sm:$0xff]
    %v215 = vld [vmem:[#allocation2 + $0x68] sm:$0xff]
    %v216 = vld [vmem:[#allocation2 + $0x70] sm:$0xff]
    %v217 = vld [vmem:[#allocation2 + $0x78] sm:$0xff]
    %v218 = vld [vmem:[#allocation2 + $0x80] sm:$0xff]
    %v219 = vld [vmem:[#allocation2 + $0x88] sm:$0xff]
    %v220 = vld [vmem:[#allocation2 + $0x90] sm:$0xff]
    %v221 = vld [vmem:[#allocation2 + $0x98] sm:$0xff]
    %v222 = vld [vmem:[#allocation2 + $0xa0] sm:$0xff]
    %v223 = vld [vmem:[#allocation2 + $0xa8] sm:$0xff]
    %v224 = vld [vmem:[#allocation2 + $0xb0] sm:$0xff]
    %v225 = vld [vmem:[#allocation2 + $0xb8] sm:$0xff]
    %v226 = vld [vmem:[#allocation2 + $0xc0] sm:$0xff]
    %v227 = vld [vmem:[#allocation2 + $0xc8] sm:$0xff]
    %v228 = vld [vmem:[#allocation2 + $0xd0] sm:$0xff]
    %v229 = vld [vmem:[#allocation2 + $0xd8] sm:$0xff]
    %v230 = vld [vmem:[#allocation2 + $0xe0] sm:$0xff]
    %v231 = vld [vmem:[#allocation2 + $0xe8] sm:$0xff]
    %v232 = vld [vmem:[#allocation2 + $0xf0] sm:$0xff]
    %v233 = vld [vmem:[#allocation2 + $0xf8] sm:$0xff]
    %v234 = vld [vmem:[#allocation2 + $0x100] sm:$0xff]
    %v235 = vld [vmem:[#allocation2 + $0x108] sm:$0xff]
    %v236 = vld [vmem:[#allocation2 + $0x110] sm:$0xff]
    %v237 = vld [vmem:[#allocation2 + $0x118] sm:$0xff]
    %v238 = vld [vmem:[#allocation2 + $0x120] sm:$0xff]
    %v239 = vld [vmem:[#allocation2 + $0x128] sm:$0xff]
    %v240 = vld [vmem:[#allocation2 + $0x130] sm:$0xff]
    %v241 = vld [vmem:[#allocation2 + $0x138] sm:$0xff]
    %v242 = vld [vmem:[#allocation2 + $0x140] sm:$0xff]
    %v243 = vld [vmem:[#allocation2 + $0x148] sm:$0xff]
    %v244 = vld [vmem:[#allocation2 + $0x150] sm:$0xff]
    %v245 = vld [vmem:[#allocation2 + $0x158] sm:$0xff]
    %v246 = vld [vmem:[#allocation2 + $0x160] sm:$0xff]
    %v247 = vld [vmem:[#allocation2 + $0x168] sm:$0xff]
    %v248 = vld [vmem:[#allocation2 + $0x170] sm:$0xff]
    %v249 = vld [vmem:[#allocation2 + $0x178] sm:$0xff]
    %v250 = vld [vmem:[%s5] sm:$0x7]
    %v252 = vperm.slane %v250, 0
    %v253 = vperm.slane %v250, 1
    %v254 = vperm.slane %v250, 2
    %258 = vmatpush.msra.mxu0 %v247
    %259 = vmatpush.msra.mxu0 %v244
    %260 = vmatpush.msra.mxu0 %v241
    %261 = vmatpush.msra.mxu0 %v238
    %262 = vmatpush.msra.mxu0 %v235
    %263 = vmatpush.msra.mxu0 %v232
    %264 = vmatpush.msra.mxu0 %v229
    %265 = vmatpush.msra.mxu0 %v226
    %266 = vmatpush.msra.mxu0 %v223
    %267 = vmatpush.msra.mxu0 %v220
    %268 = vmatpush.msra.mxu0 %v217
    %269 = vmatpush.msra.mxu0 %v214
    %270 = vmatpush.msra.mxu0 %v211
    %271 = vmatpush.msra.mxu0 %v208
    %272 = vmatpush.msra.mxu0 %v205
    %273 = vmatpush.msra.mxu0 %v202
    %274 = vmatmul.f32.gmra.mxu0 %v123
    %v275 = vpop.f32.mrf.mxu0
    %v276 = vadd.f32 %v252, %v275
    %277 = vmatmul.f32.gmra.mxu0 %v124
    %v278 = vpop.f32.mrf.mxu0
    %v279 = vadd.f32 %v252, %v278
    %280 = vdwg.mxu0
    %281 = vmatpush.msra.mxu0 %v248
    %282 = vmatpush.msra.mxu0 %v245
    %283 = vmatpush.msra.mxu0 %v242
    %284 = vmatpush.msra.mxu0 %v239
    %285 = vmatpush.msra.mxu0 %v236
    %286 = vmatpush.msra.mxu0 %v233
    %287 = vmatpush.msra.mxu0 %v230
    %288 = vmatpush.msra.mxu0 %v227
    %289 = vmatpush.msra.mxu0 %v224
    %290 = vmatpush.msra.mxu0 %v221
    %291 = vmatpush.msra.mxu0 %v218
    %292 = vmatpush.msra.mxu0 %v215
    %293 = vmatpush.msra.mxu0 %v212
    %294 = vmatpush.msra.mxu0 %v209
    %295 = vmatpush.msra.mxu0 %v206
    %296 = vmatpush.msra.mxu0 %v203
    %297 = vmatmul.f32.gmra.mxu0 %v123
    %v298 = vpop.f32.mrf.mxu0
    %v299 = vadd.f32 %v253, %v298
    %300 = vmatmul.f32.gmra.mxu0 %v124
    %v301 = vpop.f32.mrf.mxu0
    %v302 = vadd.f32 %v253, %v301
    %303 = vdwg.mxu0
    %304 = vmatpush.msra.mxu0 %v249
    %305 = vmatpush.msra.mxu0 %v246
    %306 = vmatpush.msra.mxu0 %v243
    %307 = vmatpush.msra.mxu0 %v240
    %308 = vmatpush.msra.mxu0 %v237
    %309 = vmatpush.msra.mxu0 %v234
    %310 = vmatpush.msra.mxu0 %v231
    %311 = vmatpush.msra.mxu0 %v228
    %312 = vmatpush.msra.mxu0 %v225
    %313 = vmatpush.msra.mxu0 %v222
    %314 = vmatpush.msra.mxu0 %v219
    %315 = vmatpush.msra.mxu0 %v216
    %316 = vmatpush.msra.mxu0 %v213
    %317 = vmatpush.msra.mxu0 %v210
    %318 = vmatpush.msra.mxu0 %v207
    %319 = vmatpush.msra.mxu0 %v204
    %320 = vmatmul.f32.gmra.mxu0 %v123
    %v321 = vpop.f32.mrf.mxu0
    %v322 = vadd.f32 %v254, %v321
    %323 = vmatmul.f32.gmra.mxu0 %v124
    %v324 = vpop.f32.mrf.mxu0
    %v325 = vadd.f32 %v254, %v324
    %326 = vdwg.mxu0
    %s327 = scalar_lea.vmem [#allocation2], 384
    %v328 = vld [vmem:[%s327] sm:$0xff]
    %v329 = vld [vmem:[%s327 + $0x8] sm:$0xff]
    %v330 = vld [vmem:[%s327 + $0x10] sm:$0xff]
    %v331 = vld [vmem:[%s327 + $0x18] sm:$0xff]
    %v332 = vld [vmem:[%s327 + $0x20] sm:$0xff]
    %v333 = vld [vmem:[%s327 + $0x28] sm:$0xff]
    %v334 = vld [vmem:[%s327 + $0x30] sm:$0xff]
    %v335 = vld [vmem:[%s327 + $0x38] sm:$0xff]
    %v336 = vld [vmem:[%s327 + $0x40] sm:$0xff]
    %v337 = vld [vmem:[%s327 + $0x48] sm:$0xff]
    %v338 = vld [vmem:[%s327 + $0x50] sm:$0xff]
    %v339 = vld [vmem:[%s327 + $0x58] sm:$0xff]
    %v340 = vld [vmem:[%s327 + $0x60] sm:$0xff]
    %v341 = vld [vmem:[%s327 + $0x68] sm:$0xff]
    %v342 = vld [vmem:[%s327 + $0x70] sm:$0xff]
    %v343 = vld [vmem:[%s327 + $0x78] sm:$0xff]
    %v344 = vld [vmem:[%s327 + $0x80] sm:$0xff]
    %v345 = vld [vmem:[%s327 + $0x88] sm:$0xff]
    %v346 = vld [vmem:[%s327 + $0x90] sm:$0xff]
    %v347 = vld [vmem:[%s327 + $0x98] sm:$0xff]
    %v348 = vld [vmem:[%s327 + $0xa0] sm:$0xff]
    %v349 = vld [vmem:[%s327 + $0xa8] sm:$0xff]
    %v350 = vld [vmem:[%s327 + $0xb0] sm:$0xff]
    %v351 = vld [vmem:[%s327 + $0xb8] sm:$0xff]
    %v352 = vld [vmem:[%s327 + $0xc0] sm:$0xff]
    %v353 = vld [vmem:[%s327 + $0xc8] sm:$0xff]
    %v354 = vld [vmem:[%s327 + $0xd0] sm:$0xff]
    %v355 = vld [vmem:[%s327 + $0xd8] sm:$0xff]
    %v356 = vld [vmem:[%s327 + $0xe0] sm:$0xff]
    %v357 = vld [vmem:[%s327 + $0xe8] sm:$0xff]
    %v358 = vld [vmem:[%s327 + $0xf0] sm:$0xff]
    %v359 = vld [vmem:[%s327 + $0xf8] sm:$0xff]
    %v360 = vld [vmem:[%s327 + $0x100] sm:$0xff]
    %v361 = vld [vmem:[%s327 + $0x108] sm:$0xff]
    %v362 = vld [vmem:[%s327 + $0x110] sm:$0xff]
    %v363 = vld [vmem:[%s327 + $0x118] sm:$0xff]
    %v364 = vld [vmem:[%s327 + $0x120] sm:$0xff]
    %v365 = vld [vmem:[%s327 + $0x128] sm:$0xff]
    %v366 = vld [vmem:[%s327 + $0x130] sm:$0xff]
    %v367 = vld [vmem:[%s327 + $0x138] sm:$0xff]
    %v368 = vld [vmem:[%s327 + $0x140] sm:$0xff]
    %v369 = vld [vmem:[%s327 + $0x148] sm:$0xff]
    %v370 = vld [vmem:[%s327 + $0x150] sm:$0xff]
    %v371 = vld [vmem:[%s327 + $0x158] sm:$0xff]
    %v372 = vld [vmem:[%s327 + $0x160] sm:$0xff]
    %v373 = vld [vmem:[%s327 + $0x168] sm:$0xff]
    %v374 = vld [vmem:[%s327 + $0x170] sm:$0xff]
    %v375 = vld [vmem:[%s327 + $0x178] sm:$0xff]
    %s376 = scalar_lea.vmem %s5, 3
    %v377 = vld [vmem:[%s376] sm:$0x7]
    %v379 = vperm.slane %v377, 0
    %v380 = vperm.slane %v377, 1
    %v381 = vperm.slane %v377, 2
    %385 = vmatpush.msra.mxu0 %v373
    %386 = vmatpush.msra.mxu0 %v370
    %387 = vmatpush.msra.mxu0 %v367
    %388 = vmatpush.msra.mxu0 %v364
    %389 = vmatpush.msra.mxu0 %v361
    %390 = vmatpush.msra.mxu0 %v358
    %391 = vmatpush.msra.mxu0 %v355
    %392 = vmatpush.msra.mxu0 %v352
    %393 = vmatpush.msra.mxu0 %v349
    %394 = vmatpush.msra.mxu0 %v346
    %395 = vmatpush.msra.mxu0 %v343
    %396 = vmatpush.msra.mxu0 %v340
    %397 = vmatpush.msra.mxu0 %v337
    %398 = vmatpush.msra.mxu0 %v334
    %399 = vmatpush.msra.mxu0 %v331
    %400 = vmatpush.msra.mxu0 %v328
    %401 = vmatmul.f32.gmra.mxu0 %v123
    %v402 = vpop.f32.mrf.mxu0
    %v403 = vadd.f32 %v379, %v402
    %404 = vmatmul.f32.gmra.mxu0 %v124
    %v405 = vpop.f32.mrf.mxu0
    %v406 = vadd.f32 %v379, %v405
    %407 = vdwg.mxu0
    %408 = vmatpush.msra.mxu0 %v374
    %409 = vmatpush.msra.mxu0 %v371
    %410 = vmatpush.msra.mxu0 %v368
    %411 = vmatpush.msra.mxu0 %v365
    %412 = vmatpush.msra.mxu0 %v362
    %413 = vmatpush.msra.mxu0 %v359
    %414 = vmatpush.msra.mxu0 %v356
    %415 = vmatpush.msra.mxu0 %v353
    %416 = vmatpush.msra.mxu0 %v350
    %417 = vmatpush.msra.mxu0 %v347
    %418 = vmatpush.msra.mxu0 %v344
    %419 = vmatpush.msra.mxu0 %v341
    %420 = vmatpush.msra.mxu0 %v338
    %421 = vmatpush.msra.mxu0 %v335
    %422 = vmatpush.msra.mxu0 %v332
    %423 = vmatpush.msra.mxu0 %v329
    %424 = vmatmul.f32.gmra.mxu0 %v123
    %v425 = vpop.f32.mrf.mxu0
    %v426 = vadd.f32 %v380, %v425
    %427 = vmatmul.f32.gmra.mxu0 %v124
    %v428 = vpop.f32.mrf.mxu0
    %v429 = vadd.f32 %v380, %v428
    %430 = vdwg.mxu0
    %431 = vmatpush.msra.mxu0 %v375
    %432 = vmatpush.msra.mxu0 %v372
    %433 = vmatpush.msra.mxu0 %v369
    %434 = vmatpush.msra.mxu0 %v366
    %435 = vmatpush.msra.mxu0 %v363
    %436 = vmatpush.msra.mxu0 %v360
    %437 = vmatpush.msra.mxu0 %v357
    %438 = vmatpush.msra.mxu0 %v354
    %439 = vmatpush.msra.mxu0 %v351
    %440 = vmatpush.msra.mxu0 %v348
    %441 = vmatpush.msra.mxu0 %v345
    %442 = vmatpush.msra.mxu0 %v342
    %443 = vmatpush.msra.mxu0 %v339
    %444 = vmatpush.msra.mxu0 %v336
    %445 = vmatpush.msra.mxu0 %v333
    %446 = vmatpush.msra.mxu0 %v330
    %447 = vmatmul.f32.gmra.mxu0 %v123
    %v448 = vpop.f32.mrf.mxu0
    %v449 = vadd.f32 %v381, %v448
    %450 = vmatmul.f32.gmra.mxu0 %v124
    %v451 = vpop.f32.mrf.mxu0
    %v452 = vadd.f32 %v381, %v451
    %453 = vdwg.mxu0
    %v456 = vperm.slane %v200, 0
    %v457 = vperm.slane %v201, 0
    %458 = vset.pattern.permute.xlu0 0
    %459 = vperm.xlu0 %458, %v456
    %v460 = vpop.permute.xlu0 %459
    %462 = vset.pattern.permute.xlu0 0
    %463 = vperm.xlu0 %462, %v457
    %v464 = vpop.permute.xlu0 %463
    %v466 = vmul.f32 %v276, %v460
    %v467 = vmul.f32 %v299, %v460
    %v468 = vmul.f32 %v322, %v460
    %v469 = vmul.f32 %v279, %v464
    %v470 = vmul.f32 %v302, %v464
    %v471 = vmul.f32 %v325, %v464
    %v472 = vperm.slane %v196, 0
    %v473 = vperm.slane %v198, 0
    %474 = vset.pattern.permute.xlu0 0
    %475 = vperm.xlu0 %474, %v472
    %v476 = vpop.permute.xlu0 %475
    %478 = vset.pattern.permute.xlu0 0
    %479 = vperm.xlu0 %478, %v473
    %v480 = vpop.permute.xlu0 %479
    %v482 = vmul.f32 %v403, %v476
    %v483 = vmul.f32 %v426, %v476
    %v484 = vmul.f32 %v449, %v476
    %v485 = vmul.f32 %v406, %v480
    %v486 = vmul.f32 %v429, %v480
    %v487 = vmul.f32 %v452, %v480
    %v488 = vadd.f32 %v466, %v482
    %v489 = vadd.f32 %v467, %v483
    %v490 = vadd.f32 %v468, %v484
    %v491 = vadd.f32 %v469, %v485
    %v492 = vadd.f32 %v470, %v486
    %v493 = vadd.f32 %v471, %v487
    %v494 = vlaneseq
    %v495 = vand.u32 %v494, 127
    %vm496 = vcmp.ge.s32.totalorder %v495, 0
    %vm497 = vcmp.lt.s32.totalorder %v495, 16
    %vm498 = vmand %vm496, %vm497
    %v499 = vsel %vm498, 1, 0
    %v500 = vcvt.s32.f32 %v499
    %v501 = vmul.f32 %v489, %v500
    %v502 = vmul.f32 %v492, %v500
    %503 = vmatpush.xpose.msra.mxu0 0.0
    %504 = vmatpush.xpose.msra.mxu0 0.0
    %505 = vmatpush.xpose.msra.mxu0 0.0
    %506 = vmatpush.xpose.msra.mxu0 0.0
    %507 = vmatpush.xpose.msra.mxu0 0.0
    %508 = vmatpush.xpose.msra.mxu0 0.0
    %509 = vmatpush.xpose.msra.mxu0 0.0
    %510 = vmatpush.xpose.msra.mxu0 0.0
    %511 = vmatpush.xpose.msra.mxu0 0.0
    %512 = vmatpush.xpose.msra.mxu0 0.0
    %513 = vmatpush.xpose.msra.mxu0 0.0
    %514 = vmatpush.xpose.msra.mxu0 0.0
    %515 = vmatpush.xpose.msra.mxu0 0.0
    %516 = vmatpush.xpose.msra.mxu0 0.0
    %517 = vmatpush.xpose.msra.mxu0 0.0
    %518 = vmatpush.xpose.msra.mxu0 %v501
    %519 = vmatmul.f32.gmra.mxu0 %v488
    %v520 = vpop.f32.mrf.mxu0
    %v521 = vadd.f32 0.0, %v520
    %522 = vdwg.mxu0
    %523 = vmatpush.xpose.msra.mxu0 0.0
    %524 = vmatpush.xpose.msra.mxu0 0.0
    %525 = vmatpush.xpose.msra.mxu0 0.0
    %526 = vmatpush.xpose.msra.mxu0 0.0
    %527 = vmatpush.xpose.msra.mxu0 0.0
    %528 = vmatpush.xpose.msra.mxu0 0.0
    %529 = vmatpush.xpose.msra.mxu0 0.0
    %530 = vmatpush.xpose.msra.mxu0 0.0
    %531 = vmatpush.xpose.msra.mxu0 0.0
    %532 = vmatpush.xpose.msra.mxu0 0.0
    %533 = vmatpush.xpose.msra.mxu0 0.0
    %534 = vmatpush.xpose.msra.mxu0 0.0
    %535 = vmatpush.xpose.msra.mxu0 0.0
    %536 = vmatpush.xpose.msra.mxu0 0.0
    %537 = vmatpush.xpose.msra.mxu0 0.0
    %538 = vmatpush.xpose.msra.mxu0 %v502
    %539 = vmatmul.f32.gmra.mxu0 %v491
    %v540 = vpop.f32.mrf.mxu0
    %v541 = vadd.f32 0.0, %v540
    %542 = vdwg.mxu0
    %v543 = vmul.f32 %v521, 0.25
    %v544 = vmul.f32 %v541, 0.25
    %v547 = vperm.slane %v129, 0
    %v548 = vperm.slane %v130, 0
    %v551 = vadd.f32 %v543, %v547
    %v552 = vadd.f32 %v544, %v548
    %vm553 = vcmask 64512
    %v554 = vsel %vm553, %v551, -inf
    %555 = vmax.xlane.f32.xlu0 %v554
    %v556 = vpop.xlane.xlu0 %555
    %v557 = vsel %vm553, %v552, -inf
    %558 = vmax.xlane.f32.xlu0 %v557
    %v559 = vpop.xlane.xlu0 %558
    %v560 = vsub.f32 %v551, %v556
    %v561 = vsub.f32 %v552, %v559
    %v562 = vmul.f32 %v560, 1.442695
    %v563 = vpow.pop %v562
    %v564 = vmul.f32 %v561, 1.442695
    %v565 = vpow.pop %v564
    %v566 = vsel %vm553, %v563, 0.0
    %567 = vadd.xlane.f32.xlu0 %v566
    %v568 = vpop.xlane.xlu0 %567
    %v569 = vsel %vm553, %v565, 0.0
    %570 = vadd.xlane.f32.xlu0 %v569
    %v571 = vpop.xlane.xlu0 %570
    %v572 = vrcp.pop %v568
    %v573 = vrcp.pop %v571
    %v574 = vmul.f32 %v563, %v572
    %v575 = vmul.f32 %v565, %v573
    %v576 = vmul.f32 %v490, %v500
    %v577 = vmul.f32 %v493, %v500
    %vm578 = vcmp.ge.s32.totalorder %v495, 16
    %vm579 = vcmp.lt.s32.totalorder %v495, 32
    %vm580 = vmand %vm578, %vm579
    %v581 = vsel %vm580, 1, 0
    %v582 = vcvt.s32.f32 %v581
    %v583 = vmul.f32 %v489, %v582
    %v584 = vmul.f32 %v492, %v582
    %585 = vmatpush.xpose.msra.mxu0 0.0
    %586 = vmatpush.xpose.msra.mxu0 0.0
    %587 = vmatpush.xpose.msra.mxu0 0.0
    %588 = vmatpush.xpose.msra.mxu0 0.0
    %589 = vmatpush.xpose.msra.mxu0 0.0
    %590 = vmatpush.xpose.msra.mxu0 0.0
    %591 = vmatpush.xpose.msra.mxu0 0.0
    %592 = vmatpush.xpose.msra.mxu0 0.0
    %593 = vmatpush.xpose.msra.mxu0 0.0
    %594 = vmatpush.xpose.msra.mxu0 0.0
    %595 = vmatpush.xpose.msra.mxu0 0.0
    %596 = vmatpush.xpose.msra.mxu0 0.0
    %597 = vmatpush.xpose.msra.mxu0 0.0
    %598 = vmatpush.xpose.msra.mxu0 0.0
    %599 = vmatpush.xpose.msra.mxu0 0.0
    %600 = vmatpush.xpose.msra.mxu0 %v583
    %601 = vmatmul.f32.gmra.mxu0 %v488
    %v602 = vpop.f32.mrf.mxu0
    %v603 = vadd.f32 0.0, %v602
    %604 = vdwg.mxu0
    %605 = vmatpush.xpose.msra.mxu0 0.0
    %606 = vmatpush.xpose.msra.mxu0 0.0
    %607 = vmatpush.xpose.msra.mxu0 0.0
    %608 = vmatpush.xpose.msra.mxu0 0.0
    %609 = vmatpush.xpose.msra.mxu0 0.0
    %610 = vmatpush.xpose.msra.mxu0 0.0
    %611 = vmatpush.xpose.msra.mxu0 0.0
    %612 = vmatpush.xpose.msra.mxu0 0.0
    %613 = vmatpush.xpose.msra.mxu0 0.0
    %614 = vmatpush.xpose.msra.mxu0 0.0
    %615 = vmatpush.xpose.msra.mxu0 0.0
    %616 = vmatpush.xpose.msra.mxu0 0.0
    %617 = vmatpush.xpose.msra.mxu0 0.0
    %618 = vmatpush.xpose.msra.mxu0 0.0
    %619 = vmatpush.xpose.msra.mxu0 0.0
    %620 = vmatpush.xpose.msra.mxu0 %v584
    %621 = vmatmul.f32.gmra.mxu0 %v491
    %v622 = vpop.f32.mrf.mxu0
    %v623 = vadd.f32 0.0, %v622
    %624 = vdwg.mxu0
    %v625 = vmul.f32 %v603, 0.25
    %v626 = vmul.f32 %v623, 0.25
    %v627 = vadd.f32 %v625, %v547
    %v628 = vadd.f32 %v626, %v548
    %v629 = vsel %vm553, %v627, -inf
    %630 = vmax.xlane.f32.xlu0 %v629
    %v631 = vpop.xlane.xlu0 %630
    %v632 = vsel %vm553, %v628, -inf
    %633 = vmax.xlane.f32.xlu0 %v632
    %v634 = vpop.xlane.xlu0 %633
    %v635 = vsub.f32 %v627, %v631
    %v636 = vsub.f32 %v628, %v634
    %v637 = vmul.f32 %v635, 1.442695
    %v638 = vpow.pop %v637
    %v639 = vmul.f32 %v636, 1.442695
    %v640 = vpow.pop %v639
    %v641 = vsel %vm553, %v638, 0.0
    %642 = vadd.xlane.f32.xlu0 %v641
    %v643 = vpop.xlane.xlu0 %642
    %v644 = vsel %vm553, %v640, 0.0
    %645 = vadd.xlane.f32.xlu0 %v644
    %v646 = vpop.xlane.xlu0 %645
    %v647 = vrcp.pop %v643
    %v648 = vrcp.pop %v646
    %v649 = vmul.f32 %v638, %v647
    %v650 = vmul.f32 %v640, %v648
    %v651 = vmul.f32 %v490, %v582
    %v652 = vmul.f32 %v493, %v582
    %v654 = vsel %vm553, %v649, 0
    %656 = vmatpush.msra.mxu0 0.0
    %657 = vmatpush.msra.mxu0 0.0
    %658 = vmatpush.msra.mxu0 0.0
    %659 = vmatpush.msra.mxu0 0.0
    %660 = vmatpush.msra.mxu0 0.0
    %661 = vmatpush.msra.mxu0 0.0
    %662 = vmatpush.msra.mxu0 0.0
    %663 = vmatpush.msra.mxu0 0.0
    %664 = vmatpush.msra.mxu0 0.0
    %665 = vmatpush.msra.mxu0 0.0
    %666 = vmatpush.msra.mxu0 0.0
    %667 = vmatpush.msra.mxu0 0.0
    %668 = vmatpush.msra.mxu0 0.0
    %669 = vmatpush.msra.mxu0 0.0
    %670 = vmatpush.msra.mxu0 0.0
    %671 = vmatpush.msra.mxu0 %v651
    %672 = vmatmul.f32.gmra.mxu0 %v654
    %v673 = vpop.f32.mrf.mxu0
    %v674 = vadd.f32 0.0, %v673
    %675 = vdwg.mxu0
    %v677 = vsel %vm553, %v650, 0
    %679 = vmatpush.msra.mxu0 0.0
    %680 = vmatpush.msra.mxu0 0.0
    %681 = vmatpush.msra.mxu0 0.0
    %682 = vmatpush.msra.mxu0 0.0
    %683 = vmatpush.msra.mxu0 0.0
    %684 = vmatpush.msra.mxu0 0.0
    %685 = vmatpush.msra.mxu0 0.0
    %686 = vmatpush.msra.mxu0 0.0
    %687 = vmatpush.msra.mxu0 0.0
    %688 = vmatpush.msra.mxu0 0.0
    %689 = vmatpush.msra.mxu0 0.0
    %690 = vmatpush.msra.mxu0 0.0
    %691 = vmatpush.msra.mxu0 0.0
    %692 = vmatpush.msra.mxu0 0.0
    %693 = vmatpush.msra.mxu0 0.0
    %694 = vmatpush.msra.mxu0 %v652
    %695 = vmatmul.f32.gmra.mxu0 %v677
    %v696 = vpop.f32.mrf.mxu0
    %v697 = vadd.f32 0.0, %v696
    %698 = vdwg.mxu0
    %v700 = vsel %vm553, %v574, 0
    %702 = vmatpush.msra.mxu0 0.0
    %703 = vmatpush.msra.mxu0 0.0
    %704 = vmatpush.msra.mxu0 0.0
    %705 = vmatpush.msra.mxu0 0.0
    %706 = vmatpush.msra.mxu0 0.0
    %707 = vmatpush.msra.mxu0 0.0
    %708 = vmatpush.msra.mxu0 0.0
    %709 = vmatpush.msra.mxu0 0.0
    %710 = vmatpush.msra.mxu0 0.0
    %711 = vmatpush.msra.mxu0 0.0
    %712 = vmatpush.msra.mxu0 0.0
    %713 = vmatpush.msra.mxu0 0.0
    %714 = vmatpush.msra.mxu0 0.0
    %715 = vmatpush.msra.mxu0 0.0
    %716 = vmatpush.msra.mxu0 0.0
    %717 = vmatpush.msra.mxu0 %v576
    %718 = vmatmul.f32.gmra.mxu0 %v700
    %v719 = vpop.f32.mrf.mxu0
    %v720 = vadd.f32 %v674, %v719
    %721 = vdwg.mxu0
    %v723 = vsel %vm553, %v575, 0
    %725 = vmatpush.msra.mxu0 0.0
    %726 = vmatpush.msra.mxu0 0.0
    %727 = vmatpush.msra.mxu0 0.0
    %728 = vmatpush.msra.mxu0 0.0
    %729 = vmatpush.msra.mxu0 0.0
    %730 = vmatpush.msra.mxu0 0.0
    %731 = vmatpush.msra.mxu0 0.0
    %732 = vmatpush.msra.mxu0 0.0
    %733 = vmatpush.msra.mxu0 0.0
    %734 = vmatpush.msra.mxu0 0.0
    %735 = vmatpush.msra.mxu0 0.0
    %736 = vmatpush.msra.mxu0 0.0
    %737 = vmatpush.msra.mxu0 0.0
    %738 = vmatpush.msra.mxu0 0.0
    %739 = vmatpush.msra.mxu0 0.0
    %740 = vmatpush.msra.mxu0 %v577
    %741 = vmatmul.f32.gmra.mxu0 %v723
    %v742 = vpop.f32.mrf.mxu0
    %v743 = vadd.f32 %v697, %v742
    %744 = vdwg.mxu0
    %v745 = vld [vmem:[#allocation5] sm:$0xff]
    %v746 = vld [vmem:[#allocation5 + $0x8] sm:$0xff]
    %v747 = vld [vmem:[#allocation5 + $0x10] sm:$0xff]
    %v748 = vld [vmem:[#allocation5 + $0x18] sm:$0xff]
    %v749 = vld [vmem:[#allocation5 + $0x20] sm:$0xff]
    %v750 = vld [vmem:[#allocation5 + $0x28] sm:$0xff]
    %v751 = vld [vmem:[#allocation5 + $0x30] sm:$0xff]
    %v752 = vld [vmem:[#allocation5 + $0x38] sm:$0xff]
    %v753 = vld [vmem:[#allocation5 + $0x40] sm:$0xff]
    %v754 = vld [vmem:[#allocation5 + $0x48] sm:$0xff]
    %v755 = vld [vmem:[#allocation5 + $0x50] sm:$0xff]
    %v756 = vld [vmem:[#allocation5 + $0x58] sm:$0xff]
    %v757 = vld [vmem:[#allocation5 + $0x60] sm:$0xff]
    %v758 = vld [vmem:[#allocation5 + $0x68] sm:$0xff]
    %v759 = vld [vmem:[#allocation5 + $0x70] sm:$0xff]
    %v760 = vld [vmem:[#allocation5 + $0x78] sm:$0xff]
    %v761 = vld [vmem:[%s7] sm:$0x1]
    %v763 = vperm.slane %v761, 0
    %765 = vmatpush.msra.mxu0 %v760
    %766 = vmatpush.msra.mxu0 %v759
    %767 = vmatpush.msra.mxu0 %v758
    %768 = vmatpush.msra.mxu0 %v757
    %769 = vmatpush.msra.mxu0 %v756
    %770 = vmatpush.msra.mxu0 %v755
    %771 = vmatpush.msra.mxu0 %v754
    %772 = vmatpush.msra.mxu0 %v753
    %773 = vmatpush.msra.mxu0 %v752
    %774 = vmatpush.msra.mxu0 %v751
    %775 = vmatpush.msra.mxu0 %v750
    %776 = vmatpush.msra.mxu0 %v749
    %777 = vmatpush.msra.mxu0 %v748
    %778 = vmatpush.msra.mxu0 %v747
    %779 = vmatpush.msra.mxu0 %v746
    %780 = vmatpush.msra.mxu0 %v745
    %781 = vmatmul.f32.gmra.mxu0 %v720
    %v782 = vpop.f32.mrf.mxu0
    %v783 = vadd.f32 %v763, %v782
    %784 = vmatmul.f32.gmra.mxu0 %v743
    %v785 = vpop.f32.mrf.mxu0
    %v786 = vadd.f32 %v763, %v785
    %787 = vdwg.mxu0
    %s788 = scalar_lea.vmem [#allocation5], 128
    %v789 = vld [vmem:[%s788] sm:$0xff]
    %v790 = vld [vmem:[%s788 + $0x8] sm:$0xff]
    %v791 = vld [vmem:[%s788 + $0x10] sm:$0xff]
    %v792 = vld [vmem:[%s788 + $0x18] sm:$0xff]
    %v793 = vld [vmem:[%s788 + $0x20] sm:$0xff]
    %v794 = vld [vmem:[%s788 + $0x28] sm:$0xff]
    %v795 = vld [vmem:[%s788 + $0x30] sm:$0xff]
    %v796 = vld [vmem:[%s788 + $0x38] sm:$0xff]
    %v797 = vld [vmem:[%s788 + $0x40] sm:$0xff]
    %v798 = vld [vmem:[%s788 + $0x48] sm:$0xff]
    %v799 = vld [vmem:[%s788 + $0x50] sm:$0xff]
    %v800 = vld [vmem:[%s788 + $0x58] sm:$0xff]
    %v801 = vld [vmem:[%s788 + $0x60] sm:$0xff]
    %v802 = vld [vmem:[%s788 + $0x68] sm:$0xff]
    %v803 = vld [vmem:[%s788 + $0x70] sm:$0xff]
    %v804 = vld [vmem:[%s788 + $0x78] sm:$0xff]
    %s805 = scalar_lea.vmem %s7, 1
    %v806 = vld [vmem:[%s805] sm:$0x1]
    %v808 = vperm.slane %v806, 0
    %810 = vmatpush.msra.mxu0 %v804
    %811 = vmatpush.msra.mxu0 %v803
    %812 = vmatpush.msra.mxu0 %v802
    %813 = vmatpush.msra.mxu0 %v801
    %814 = vmatpush.msra.mxu0 %v800
    %815 = vmatpush.msra.mxu0 %v799
    %816 = vmatpush.msra.mxu0 %v798
    %817 = vmatpush.msra.mxu0 %v797
    %818 = vmatpush.msra.mxu0 %v796
    %819 = vmatpush.msra.mxu0 %v795
    %820 = vmatpush.msra.mxu0 %v794
    %821 = vmatpush.msra.mxu0 %v793
    %822 = vmatpush.msra.mxu0 %v792
    %823 = vmatpush.msra.mxu0 %v791
    %824 = vmatpush.msra.mxu0 %v790
    %825 = vmatpush.msra.mxu0 %v789
    %826 = vmatmul.f32.gmra.mxu0 %v720
    %v827 = vpop.f32.mrf.mxu0
    %v828 = vadd.f32 %v808, %v827
    %829 = vmatmul.f32.gmra.mxu0 %v743
    %v830 = vpop.f32.mrf.mxu0
    %v831 = vadd.f32 %v808, %v830
    %832 = vdwg.mxu0
    %v833 = vmul.f32 %v783, %v460
    %v834 = vmul.f32 %v786, %v464
    %v835 = vmul.f32 %v828, %v476
    %v836 = vmul.f32 %v831, %v480
    %v837 = vadd.f32 %v833, %v835
    %v838 = vadd.f32 %v834, %v836
    %v839 = vadd.f32 %v837, %v123
    %v840 = vadd.f32 %v838, %v124
    %v841 = vld [vmem:[%s8] sm:$0x1]
    %s842 = scalar_lea.vmem %s8, 1
    %v843 = vld [vmem:[%s842] sm:$0x1]
    %844 = vset.pattern.permute.xlu0 0
    %845 = vperm.xlu0 %844, %v200
    %v846 = vpop.permute.xlu0 %845
    %v848 = vperm.slane %v846, 0
    %849 = vset.pattern.permute.xlu0 0
    %850 = vperm.xlu0 %849, %v201
    %v851 = vpop.permute.xlu0 %850
    %v853 = vperm.slane %v851, 0
    %v854 = vmul.f32 %v841, %v848
    %v855 = vmul.f32 %v841, %v853
    %856 = vset.pattern.permute.xlu0 0
    %857 = vperm.xlu0 %856, %v196
    %v858 = vpop.permute.xlu0 %857
    %v860 = vperm.slane %v858, 0
    %861 = vset.pattern.permute.xlu0 0
    %862 = vperm.xlu0 %861, %v198
    %v863 = vpop.permute.xlu0 %862
    %v865 = vperm.slane %v863, 0
    %v866 = vmul.f32 %v843, %v860
    %v867 = vmul.f32 %v843, %v865
    %v868 = vadd.f32 %v854, %v866
    %v869 = vadd.f32 %v855, %v867
    %v870 = vld [vmem:[%s9] sm:$0x1]
    %s871 = scalar_lea.vmem %s9, 1
    %v872 = vld [vmem:[%s871] sm:$0x1]
    %v873 = vmul.f32 %v870, %v848
    %v874 = vmul.f32 %v870, %v853
    %v875 = vmul.f32 %v872, %v860
    %v876 = vmul.f32 %v872, %v865
    %v877 = vadd.f32 %v873, %v875
    %v878 = vadd.f32 %v874, %v876
    %879 = vadd.xlane.f32.xlu0 %v839
    %v880 = vpop.xlane.xlu0 %879
    %881 = vadd.xlane.f32.xlu0 %v840
    %v882 = vpop.xlane.xlu0 %881
    %v883 = vmul.f32 %v880, 0.03125
    %v884 = vmul.f32 %v882, 0.03125
    %v885 = vmul.f32 %v839, %v839
    %v886 = vmul.f32 %v840, %v840
    %887 = vadd.xlane.f32.xlu0 %v885
    %v888 = vpop.xlane.xlu0 %887
    %889 = vadd.xlane.f32.xlu0 %v886
    %v890 = vpop.xlane.xlu0 %889
    %v891 = vmul.f32 %v888, 0.03125
    %v892 = vmul.f32 %v890, 0.03125
    %v893 = vmul.f32 %v883, %v883
    %v894 = vmul.f32 %v884, %v884
    %v895 = vsub.f32 %v891, %v893
    %v896 = vsub.f32 %v892, %v894
    %v897 = vsub.f32 %v839, %v883
    %v898 = vsub.f32 %v840, %v884
    %v899 = vadd.f32 %v895, 1e-12
    %v900 = vadd.f32 %v896, 1e-12
    %v901 = vrsqrt.pop %v899
    %v902 = vmul.f32 %v901, %v899
    %v903 = vmul.f32 %v902, %v901
    %v904 = vmul.f32 0.5, %v903
    %v905 = vsub.f32 1.5, %v904
    %v906 = vmul.f32 %v901, %v905
    %vm907 = vweird.f32 %v899
    %vm908 = vweird.f32 %v901
    %vm909 = vmor %vm907, %vm908
    %v910 = vsel %vm909, %v901, %v906
    %v911 = vrsqrt.pop %v900
    %v912 = vmul.f32 %v911, %v900
    %v913 = vmul.f32 %v912, %v911
    %v914 = vmul.f32 0.5, %v913
    %v915 = vsub.f32 1.5, %v914
    %v916 = vmul.f32 %v911, %v915
    %vm917 = vweird.f32 %v900
    %vm918 = vweird.f32 %v911
    %vm919 = vmor %vm917, %vm918
    %v920 = vsel %vm919, %v911, %v916
    %v921 = vmul.f32 %v897, %v910
    %v922 = vmul.f32 %v898, %v920
    %v925 = vperm.slane %v868, 0
    %v926 = vperm.slane %v869, 0
    %v929 = vmul.f32 %v921, %v925
    %v930 = vmul.f32 %v922, %v926
    %v933 = vperm.slane %v877, 0
    %v934 = vperm.slane %v878, 0
    %v937 = vadd.f32 %v929, %v933
    %v938 = vadd.f32 %v930, %v934
    %v939 = vrot.slane %v937, 4
    %v940 = vadd.f32 %v937, %v939
    %v941 = vrot.slane %v940, 2
    %v942 = vadd.f32 %v940, %v941
    %v943 = vrot.slane %v942, 1
    %v944 = vadd.f32 %v942, %v943
    %v945 = vrot.slane %v938, 4
    %v946 = vadd.f32 %v938, %v945
    %v947 = vrot.slane %v946, 2
    %v948 = vadd.f32 %v946, %v947
    %v949 = vrot.slane %v948, 1
    %v950 = vadd.f32 %v948, %v949
    %v951 = vmul.f32 %v944, %v149
    %v952 = vmul.f32 %v950, %v149
    %v953 = vld [vmem:[%s10] sm:$0x1]
    %v955 = vperm.slane %v953, 0
    %v957 = vmul.f32 %v951, %v955
    %v958 = vmul.f32 %v952, %v955
    %v961 = vrot.slane %v958, 7
    %v962 = vsel %vm161, %v961, %v957
    %v964 = vsel %vm164, %v962, 0.0
    %965 = vadd.xlane.f32.xlu0 %v964
    %v966 = vpop.xlane.xlu0 %965
    %v967 = vld [vmem:[%s11] sm:$0x1]
    %v969 = vperm.slane %v967, 0
    %v971 = vadd.f32 %v966, %v969
    %s972 = scalar_lea.vmem %s10, 1
    %v973 = vld [vmem:[%s972] sm:$0x1]
    %v975 = vperm.slane %v973, 0
    %v977 = vmul.f32 %v951, %v975
    %v978 = vmul.f32 %v952, %v975
    %v981 = vrot.slane %v978, 7
    %v982 = vsel %vm161, %v981, %v977
    %v984 = vsel %vm164, %v982, 0.0
    %985 = vadd.xlane.f32.xlu0 %v984
    %v986 = vpop.xlane.xlu0 %985
    %s987 = scalar_lea.vmem %s11, 1
    %v988 = vld [vmem:[%s987] sm:$0x1]
    %v990 = vperm.slane %v988, 0
    %v992 = vadd.f32 %v986, %v990
    %vm993 = vcmp.gt.f32.partialorder %v992, %v971
    %v994 = vsel %vm993, 1, 0
    %v995 = vcvt.s32.f32 %v994
    %v997 = vrot.slane %v995, 1
    %v999 = vsub.f32 1.0, %v995
    %v1000 = vsub.f32 1.0, %v997
    %v1001 = vld [vmem:[#allocation7] sm:$0xff]
    %v1002 = vld [vmem:[#allocation7 + $0x8] sm:$0xff]
    %v1003 = vld [vmem:[#allocation7 + $0x10] sm:$0xff]
    %v1004 = vld [vmem:[#allocation7 + $0x18] sm:$0xff]
    %v1005 = vld [vmem:[#allocation7 + $0x20] sm:$0xff]
    %v1006 = vld [vmem:[#allocation7 + $0x28] sm:$0xff]
    %v1007 = vld [vmem:[#allocation7 + $0x30] sm:$0xff]
    %v1008 = vld [vmem:[#allocation7 + $0x38] sm:$0xff]
    %v1009 = vld [vmem:[#allocation7 + $0x40] sm:$0xff]
    %v1010 = vld [vmem:[#allocation7 + $0x48] sm:$0xff]
    %v1011 = vld [vmem:[#allocation7 + $0x50] sm:$0xff]
    %v1012 = vld [vmem:[#allocation7 + $0x58] sm:$0xff]
    %v1013 = vld [vmem:[#allocation7 + $0x60] sm:$0xff]
    %v1014 = vld [vmem:[#allocation7 + $0x68] sm:$0xff]
    %v1015 = vld [vmem:[#allocation7 + $0x70] sm:$0xff]
    %v1016 = vld [vmem:[#allocation7 + $0x78] sm:$0xff]
    %v1017 = vld [vmem:[%s13] sm:$0x1]
    %v1019 = vperm.slane %v1017, 0
    %1021 = vmatpush.msra.mxu0 %v1016
    %1022 = vmatpush.msra.mxu0 %v1015
    %1023 = vmatpush.msra.mxu0 %v1014
    %1024 = vmatpush.msra.mxu0 %v1013
    %1025 = vmatpush.msra.mxu0 %v1012
    %1026 = vmatpush.msra.mxu0 %v1011
    %1027 = vmatpush.msra.mxu0 %v1010
    %1028 = vmatpush.msra.mxu0 %v1009
    %1029 = vmatpush.msra.mxu0 %v1008
    %1030 = vmatpush.msra.mxu0 %v1007
    %1031 = vmatpush.msra.mxu0 %v1006
    %1032 = vmatpush.msra.mxu0 %v1005
    %1033 = vmatpush.msra.mxu0 %v1004
    %1034 = vmatpush.msra.mxu0 %v1003
    %1035 = vmatpush.msra.mxu0 %v1002
    %1036 = vmatpush.msra.mxu0 %v1001
    %1037 = vmatmul.f32.gmra.mxu0 %v937
    %v1038 = vpop.f32.mrf.mxu0
    %v1039 = vadd.f32 %v1019, %v1038
    %1040 = vmatmul.f32.gmra.mxu0 %v938
    %v1041 = vpop.f32.mrf.mxu0
    %v1042 = vadd.f32 %v1019, %v1041
    %1043 = vdwg.mxu0
    %v1044 = vmul.f32 %v1039, %v1039
    %v1045 = vmul.f32 %v1042, %v1042
    %v1046 = vmul.f32 %v1039, %v1044
    %v1047 = vmul.f32 %v1042, %v1045
    %v1048 = vmul.f32 %v1046, 0.044715
    %v1049 = vmul.f32 %v1047, 0.044715
    %v1050 = vadd.f32 %v1039, %v1048
    %v1051 = vadd.f32 %v1042, %v1049
    %v1052 = vmul.f32 %v1050, 0.7978846
    %v1053 = vmul.f32 %v1051, 0.7978846
    %v1054 = vtanh.pop %v1052
    %v1055 = vtanh.pop %v1053
    %v1056 = vadd.f32 %v1054, 1.0
    %v1057 = vadd.f32 %v1055, 1.0
    %v1058 = vmul.f32 %v1056, 0.5
    %v1059 = vmul.f32 %v1057, 0.5
    %v1060 = vmul.f32 %v1039, %v1058
    %v1061 = vmul.f32 %v1042, %v1059
    %s1062 = scalar_lea.vmem [#allocation7], 128
    %v1063 = vld [vmem:[%s1062] sm:$0xff]
    %v1064 = vld [vmem:[%s1062 + $0x8] sm:$0xff]
    %v1065 = vld [vmem:[%s1062 + $0x10] sm:$0xff]
    %v1066 = vld [vmem:[%s1062 + $0x18] sm:$0xff]
    %v1067 = vld [vmem:[%s1062 + $0x20] sm:$0xff]
    %v1068 = vld [vmem:[%s1062 + $0x28] sm:$0xff]
    %v1069 = vld [vmem:[%s1062 + $0x30] sm:$0xff]
    %v1070 = vld [vmem:[%s1062 + $0x38] sm:$0xff]
    %v1071 = vld [vmem:[%s1062 + $0x40] sm:$0xff]
    %v1072 = vld [vmem:[%s1062 + $0x48] sm:$0xff]
    %v1073 = vld [vmem:[%s1062 + $0x50] sm:$0xff]
    %v1074 = vld [vmem:[%s1062 + $0x58] sm:$0xff]
    %v1075 = vld [vmem:[%s1062 + $0x60] sm:$0xff]
    %v1076 = vld [vmem:[%s1062 + $0x68] sm:$0xff]
    %v1077 = vld [vmem:[%s1062 + $0x70] sm:$0xff]
    %v1078 = vld [vmem:[%s1062 + $0x78] sm:$0xff]
    %s1079 = scalar_lea.vmem %s13, 1
    %v1080 = vld [vmem:[%s1079] sm:$0x1]
    %v1082 = vperm.slane %v1080, 0
    %1084 = vmatpush.msra.mxu0 %v1078
    %1085 = vmatpush.msra.mxu0 %v1077
    %1086 = vmatpush.msra.mxu0 %v1076
    %1087 = vmatpush.msra.mxu0 %v1075
    %1088 = vmatpush.msra.mxu0 %v1074
    %1089 = vmatpush.msra.mxu0 %v1073
    %1090 = vmatpush.msra.mxu0 %v1072
    %1091 = vmatpush.msra.mxu0 %v1071
    %1092 = vmatpush.msra.mxu0 %v1070
    %1093 = vmatpush.msra.mxu0 %v1069
    %1094 = vmatpush.msra.mxu0 %v1068
    %1095 = vmatpush.msra.mxu0 %v1067
    %1096 = vmatpush.msra.mxu0 %v1066
    %1097 = vmatpush.msra.mxu0 %v1065
    %1098 = vmatpush.msra.mxu0 %v1064
    %1099 = vmatpush.msra.mxu0 %v1063
    %1100 = vmatmul.f32.gmra.mxu0 %v937
    %v1101 = vpop.f32.mrf.mxu0
    %v1102 = vadd.f32 %v1082, %v1101
    %1103 = vmatmul.f32.gmra.mxu0 %v938
    %v1104 = vpop.f32.mrf.mxu0
    %v1105 = vadd.f32 %v1082, %v1104
    %1106 = vdwg.mxu0
    %v1107 = vmul.f32 %v1102, %v1102
    %v1108 = vmul.f32 %v1105, %v1105
    %v1109 = vmul.f32 %v1102, %v1107
    %v1110 = vmul.f32 %v1105, %v1108
    %v1111 = vmul.f32 %v1109, 0.044715
    %v1112 = vmul.f32 %v1110, 0.044715
    %v1113 = vadd.f32 %v1102, %v1111
    %v1114 = vadd.f32 %v1105, %v1112
    %v1115 = vmul.f32 %v1113, 0.7978846
    %v1116 = vmul.f32 %v1114, 0.7978846
    %v1117 = vtanh.pop %v1115
    %v1118 = vtanh.pop %v1116
    %v1119 = vadd.f32 %v1117, 1.0
    %v1120 = vadd.f32 %v1118, 1.0
    %v1121 = vmul.f32 %v1119, 0.5
    %v1122 = vmul.f32 %v1120, 0.5
    %v1123 = vmul.f32 %v1102, %v1121
    %v1124 = vmul.f32 %v1105, %v1122
    %v1125 = vld [vmem:[#allocation8] sm:$0xff]
    %v1126 = vld [vmem:[#allocation8 + $0x8] sm:$0xff]
    %v1127 = vld [vmem:[#allocation8 + $0x10] sm:$0xff]
    %v1128 = vld [vmem:[#allocation8 + $0x18] sm:$0xff]
    %v1129 = vld [vmem:[#allocation8 + $0x20] sm:$0xff]
    %v1130 = vld [vmem:[#allocation8 + $0x28] sm:$0xff]
    %v1131 = vld [vmem:[#allocation8 + $0x30] sm:$0xff]
    %v1132 = vld [vmem:[#allocation8 + $0x38] sm:$0xff]
    %v1133 = vld [vmem:[#allocation8 + $0x40] sm:$0xff]
    %v1134 = vld [vmem:[#allocation8 + $0x48] sm:$0xff]
    %v1135 = vld [vmem:[#allocation8 + $0x50] sm:$0xff]
    %v1136 = vld [vmem:[#allocation8 + $0x58] sm:$0xff]
    %v1137 = vld [vmem:[#allocation8 + $0x60] sm:$0xff]
    %v1138 = vld [vmem:[#allocation8 + $0x68] sm:$0xff]
    %v1139 = vld [vmem:[#allocation8 + $0x70] sm:$0xff]
    %v1140 = vld [vmem:[#allocation8 + $0x78] sm:$0xff]
    %v1141 = vld [vmem:[%s15] sm:$0x1]
    %v1143 = vperm.slane %v1141, 0
    %1145 = vmatpush.msra.mxu0 %v1140
    %1146 = vmatpush.msra.mxu0 %v1139
    %1147 = vmatpush.msra.mxu0 %v1138
    %1148 = vmatpush.msra.mxu0 %v1137
    %1149 = vmatpush.msra.mxu0 %v1136
    %1150 = vmatpush.msra.mxu0 %v1135
    %1151 = vmatpush.msra.mxu0 %v1134
    %1152 = vmatpush.msra.mxu0 %v1133
    %1153 = vmatpush.msra.mxu0 %v1132
    %1154 = vmatpush.msra.mxu0 %v1131
    %1155 = vmatpush.msra.mxu0 %v1130
    %1156 = vmatpush.msra.mxu0 %v1129
    %1157 = vmatpush.msra.mxu0 %v1128
    %1158 = vmatpush.msra.mxu0 %v1127
    %1159 = vmatpush.msra.mxu0 %v1126
    %1160 = vmatpush.msra.mxu0 %v1125
    %1161 = vmatmul.f32.gmra.mxu0 %v1060
    %v1162 = vpop.f32.mrf.mxu0
    %v1163 = vadd.f32 %v1143, %v1162
    %1164 = vmatmul.f32.gmra.mxu0 %v1061
    %v1165 = vpop.f32.mrf.mxu0
    %v1166 = vadd.f32 %v1143, %v1165
    %1167 = vdwg.mxu0
    %s1168 = scalar_lea.vmem [#allocation8], 128
    %v1169 = vld [vmem:[%s1168] sm:$0xff]
    %v1170 = vld [vmem:[%s1168 + $0x8] sm:$0xff]
    %v1171 = vld [vmem:[%s1168 + $0x10] sm:$0xff]
    %v1172 = vld [vmem:[%s1168 + $0x18] sm:$0xff]
    %v1173 = vld [vmem:[%s1168 + $0x20] sm:$0xff]
    %v1174 = vld [vmem:[%s1168 + $0x28] sm:$0xff]
    %v1175 = vld [vmem:[%s1168 + $0x30] sm:$0xff]
    %v1176 = vld [vmem:[%s1168 + $0x38] sm:$0xff]
    %v1177 = vld [vmem:[%s1168 + $0x40] sm:$0xff]
    %v1178 = vld [vmem:[%s1168 + $0x48] sm:$0xff]
    %v1179 = vld [vmem:[%s1168 + $0x50] sm:$0xff]
    %v1180 = vld [vmem:[%s1168 + $0x58] sm:$0xff]
    %v1181 = vld [vmem:[%s1168 + $0x60] sm:$0xff]
    %v1182 = vld [vmem:[%s1168 + $0x68] sm:$0xff]
    %v1183 = vld [vmem:[%s1168 + $0x70] sm:$0xff]
    %v1184 = vld [vmem:[%s1168 + $0x78] sm:$0xff]
    %s1185 = scalar_lea.vmem %s15, 1
    %v1186 = vld [vmem:[%s1185] sm:$0x1]
    %v1188 = vperm.slane %v1186, 0
    %1190 = vmatpush.msra.mxu0 %v1184
    %1191 = vmatpush.msra.mxu0 %v1183
    %1192 = vmatpush.msra.mxu0 %v1182
    %1193 = vmatpush.msra.mxu0 %v1181
    %1194 = vmatpush.msra.mxu0 %v1180
    %1195 = vmatpush.msra.mxu0 %v1179
    %1196 = vmatpush.msra.mxu0 %v1178
    %1197 = vmatpush.msra.mxu0 %v1177
    %1198 = vmatpush.msra.mxu0 %v1176
    %1199 = vmatpush.msra.mxu0 %v1175
    %1200 = vmatpush.msra.mxu0 %v1174
    %1201 = vmatpush.msra.mxu0 %v1173
    %1202 = vmatpush.msra.mxu0 %v1172
    %1203 = vmatpush.msra.mxu0 %v1171
    %1204 = vmatpush.msra.mxu0 %v1170
    %1205 = vmatpush.msra.mxu0 %v1169
    %1206 = vmatmul.f32.gmra.mxu0 %v1123
    %v1207 = vpop.f32.mrf.mxu0
    %v1208 = vadd.f32 %v1188, %v1207
    %1209 = vmatmul.f32.gmra.mxu0 %v1124
    %v1210 = vpop.f32.mrf.mxu0
    %v1211 = vadd.f32 %v1188, %v1210
    %1212 = vdwg.mxu0
    %v1215 = vperm.slane %v999, 0
    %v1216 = vperm.slane %v1000, 0
    %1217 = vset.pattern.permute.xlu0 0
    %1218 = vperm.xlu0 %1217, %v1215
    %v1219 = vpop.permute.xlu0 %1218
    %1221 = vset.pattern.permute.xlu0 0
    %1222 = vperm.xlu0 %1221, %v1216
    %v1223 = vpop.permute.xlu0 %1222
    %v1225 = vmul.f32 %v1163, %v1219
    %v1226 = vmul.f32 %v1166, %v1223
    %v1227 = vperm.slane %v995, 0
    %v1228 = vperm.slane %v997, 0
    %1229 = vset.pattern.permute.xlu0 0
    %1230 = vperm.xlu0 %1229, %v1227
    %v1231 = vpop.permute.xlu0 %1230
    %1233 = vset.pattern.permute.xlu0 0
    %1234 = vperm.xlu0 %1233, %v1228
    %v1235 = vpop.permute.xlu0 %1234
    %v1237 = vmul.f32 %v1208, %v1231
    %v1238 = vmul.f32 %v1211, %v1235
    %v1239 = vadd.f32 %v1225, %v1237
    %v1240 = vadd.f32 %v1226, %v1238
    %v1241 = vadd.f32 %v937, %v1239
    %v1242 = vadd.f32 %v938, %v1240
    %v1243 = vld [vmem:[%s16] sm:$0x1]
    %v1244 = vld [vmem:[%s17] sm:$0x1]
    %1245 = vadd.xlane.f32.xlu0 %v1241
    %v1246 = vpop.xlane.xlu0 %1245
    %1247 = vadd.xlane.f32.xlu0 %v1242
    %v1248 = vpop.xlane.xlu0 %1247
    %v1249 = vmul.f32 %v1246, 0.03125
    %v1250 = vmul.f32 %v1248, 0.03125
    %v1251 = vmul.f32 %v1241, %v1241
    %v1252 = vmul.f32 %v1242, %v1242
    %1253 = vadd.xlane.f32.xlu0 %v1251
    %v1254 = vpop.xlane.xlu0 %1253
    %1255 = vadd.xlane.f32.xlu0 %v1252
    %v1256 = vpop.xlane.xlu0 %1255
    %v1257 = vmul.f32 %v1254, 0.03125
    %v1258 = vmul.f32 %v1256, 0.03125
    %v1259 = vmul.f32 %v1249, %v1249
    %v1260 = vmul.f32 %v1250, %v1250
    %v1261 = vsub.f32 %v1257, %v1259
    %v1262 = vsub.f32 %v1258, %v1260
    %v1263 = vsub.f32 %v1241, %v1249
    %v1264 = vsub.f32 %v1242, %v1250
    %v1265 = vadd.f32 %v1261, 1e-12
    %v1266 = vadd.f32 %v1262, 1e-12
    %v1267 = vrsqrt.pop %v1265
    %v1268 = vmul.f32 %v1267, %v1265
    %v1269 = vmul.f32 %v1268, %v1267
    %v1270 = vmul.f32 0.5, %v1269
    %v1271 = vsub.f32 1.5, %v1270
    %v1272 = vmul.f32 %v1267, %v1271
    %vm1273 = vweird.f32 %v1265
    %vm1274 = vweird.f32 %v1267
    %vm1275 = vmor %vm1273, %vm1274
    %v1276 = vsel %vm1275, %v1267, %v1272
    %v1277 = vrsqrt.pop %v1266
    %v1278 = vmul.f32 %v1277, %v1266
    %v1279 = vmul.f32 %v1278, %v1277
    %v1280 = vmul.f32 0.5, %v1279
    %v1281 = vsub.f32 1.5, %v1280
    %v1282 = vmul.f32 %v1277, %v1281
    %vm1283 = vweird.f32 %v1266
    %vm1284 = vweird.f32 %v1277
    %vm1285 = vmor %vm1283, %vm1284
    %v1286 = vsel %vm1285, %v1277, %v1282
    %v1287 = vmul.f32 %v1263, %v1276
    %v1288 = vmul.f32 %v1264, %v1286
    %v1290 = vperm.slane %v1243, 0
    %v1292 = vmul.f32 %v1287, %v1290
    %v1293 = vmul.f32 %v1288, %v1290
    %v1295 = vperm.slane %v1244, 0
    %v1297 = vadd.f32 %v1292, %v1295
    %v1298 = vadd.f32 %v1293, %v1295
    %1299 = vst [vmem:[#allocation10] sm:$0xff] %v1297
    %1300 = vst [vmem:[#allocation10 + $0x8] sm:$0xff] %v1298
    // Predicated region
    $region90: #{momoshare_forward.1} parent=1 // pred_check
      _
    $region91: #{momoshare_forward.1} parent=1 // pred_check_branch
      %1302 = sbr.rel (0) target = $region93
    $region92: #{momoshare_forward.1} parent=1 // pred_region
      %1304 = vsyncadd [#allocation4], 0
      %s1305 = sshll.u32 [#allocation10], 4
      %s1306 = int_to_ptr.vmem [resolvable:$true] %s1305
      %s1307 = sshll.u32 %s18, 4
      %s1308 = int_to_ptr.hbm [resolvable:$true] %s1307
      %1313 = dma.vmem_to_hbm [thread:$0]  %s1306, 256, %s1308, [#allocation4], 128, 128, 8
    $region93: #{momoshare_forward.1} parent=1 // pred_fallthru
      _
    // Predicated region
    $region94: #{momoshare_forward.1} parent=1 // pred_check
      _
    $region95: #{momoshare_forward.1} parent=1 // pred_check_branch
      %1315 = sbr.rel (0) target = $region97
    $region96: #{momoshare_forward.1} parent=1 // pred_region
      %1317 = dma.done [#allocation4], 256
    $region97: #{momoshare_forward.1} parent=1 // pred_fallthru
      _
    %1318 = vsyncpa [#allocation3], 1
    %1319 = vsyncpa [#allocation6], 1
    %1320 = vsyncpa [#allocation9], 1
    %1321 = vsyncpa [#allocation4], 1

</llo_original>
